<compile_context>
chip_gen: v5e
topology: v5e:2x2
jax: 0.10.0
libtpu: 0.0.40
codegen_flags: <defaults>
</compile_context>

<pallas_src>
import functools

import jax
import jax.numpy as jnp
from jax.experimental import pallas as pl
from jax.experimental.pallas import tpu as pltpu

LN_EPS = 1e-12
QMIN = 0.0
QMAX = 255.0  # quint8 per-tensor affine fake quant (default BERT QAT activation)


def _self_output_kernel(x_ref, res_ref, w_ref, b_ref, gamma_ref, beta_ref,
                        qp_ref, o_ref):
    # dense: x @ W + b  (W already transposed to (H_in, H_out)); bf16 inputs,
    # f32 accumulation on the MXU.
    h = jnp.dot(x_ref[...], w_ref[...], preferred_element_type=jnp.float32)
    h = h + b_ref[...].astype(jnp.float32)

    # dropout -> identity at inference
    # TODO(synk): training-mode dropout (random mask) not implemented; eval path only.

    # residual add (f32)
    h = h + res_ref[...].astype(jnp.float32)

    # fake quantize (quantize-dequantize), per-tensor affine.
    # scale / zero_point are scalars in SMEM; use scalar reciprocal so the
    # per-element op is a VPU multiply, not an EUP divide.
    scale = qp_ref[0]
    zp = qp_ref[1]
    inv_scale = 1.0 / scale
    q = jnp.clip(jnp.round(h * inv_scale + zp), QMIN, QMAX)
    h = (q - zp) * scale

    # LayerNorm over hidden axis — single-pass statistics.
    inv_h = 1.0 / h.shape[-1]
    s1 = jnp.sum(h, axis=-1, keepdims=True)
    s2 = jnp.sum(h * h, axis=-1, keepdims=True)
    mean = s1 * inv_h
    var = jnp.maximum(s2 * inv_h - mean * mean, 0.0)
    normed = (h - mean) * jax.lax.rsqrt(var + LN_EPS)
    out = normed * gamma_ref[...].astype(jnp.float32) \
        + beta_ref[...].astype(jnp.float32)
    o_ref[...] = out.astype(o_ref.dtype)


@functools.partial(jax.jit, static_argnames=("row_tile",))
def qaware_bert_self_output(hidden_states, input_tensor, w_t, bias, gamma, beta,
                            qparams, *, row_tile=256):
    """hidden_states, input_tensor: (B, S, H); w_t: (H, H) pre-transposed;
    bias/gamma/beta: (H,); qparams: (2,) = [scale, zero_point].

    row_tile: 256 is a good default for v6e/v7x; use 128 on v5e (smaller
    default scoped VMEM)."""
    B, S, H = hidden_states.shape
    rows = B * S

    # Matmul operands in bf16 (f32 accumulation in the kernel); epilogue stays f32.
    x2d = hidden_states.reshape(rows, H).astype(jnp.bfloat16)
    r2d = input_tensor.reshape(rows, H).astype(jnp.float32)
    w_bf = w_t.astype(jnp.bfloat16)
    b2d = bias.reshape(1, H).astype(jnp.float32)
    g2d = gamma.reshape(1, H).astype(jnp.float32)
    be2d = beta.reshape(1, H).astype(jnp.float32)
    qp1d = qparams.reshape(2).astype(jnp.float32)

    # Pad rows up to a multiple of the tile (no divisibility requirement).
    padded_rows = pl.cdiv(rows, row_tile) * row_tile
    if padded_rows != rows:
        pad = padded_rows - rows
        x2d = jnp.pad(x2d, ((0, pad), (0, 0)))
        r2d = jnp.pad(r2d, ((0, pad), (0, 0)))
    grid = (padded_rows // row_tile,)

    out_dtype = hidden_states.dtype
    cost = pl.CostEstimate(
        flops=2 * padded_rows * H * H,
        transcendentals=padded_rows,  # one rsqrt per row
        bytes_accessed=(padded_rows * H * 2        # x (bf16)
                        + padded_rows * H * 4      # residual (f32)
                        + H * H * 2                # weight (bf16)
                        + padded_rows * H * jnp.dtype(out_dtype).itemsize),
    )

    out2d = pl.pallas_call(
        _self_output_kernel,
        out_shape=jax.ShapeDtypeStruct((padded_rows, H), out_dtype),
        grid=grid,
        in_specs=[
            pl.BlockSpec((row_tile, H), lambda i: (i, 0)),    # x rows (bf16)
            pl.BlockSpec((row_tile, H), lambda i: (i, 0)),    # residual rows (f32)
            pl.BlockSpec((H, H), lambda i: (0, 0)),           # weight (bf16, resident)
            pl.BlockSpec((1, H), lambda i: (0, 0)),           # bias
            pl.BlockSpec((1, H), lambda i: (0, 0)),           # LN gamma
            pl.BlockSpec((1, H), lambda i: (0, 0)),           # LN beta
            pl.BlockSpec(memory_space=pltpu.MemorySpace.SMEM),  # [scale, zp] scalars
        ],
        out_specs=pl.BlockSpec((row_tile, H), lambda i: (i, 0)),
        compiler_params=pltpu.CompilerParams(
            dimension_semantics=("parallel",),
            vmem_limit_bytes=48 * 1024 * 1024),
        cost_estimate=cost,
    )(x2d, r2d, w_bf, b2d, g2d, be2d, qp1d)

    return out2d[:rows].reshape(B, S, H)


def _reference(hidden_states, input_tensor, w_t, bias, gamma, beta, qparams):
    # Reference with the same bf16 matmul-input rounding as the kernel.
    x = hidden_states.astype(jnp.bfloat16)
    w = w_t.astype(jnp.bfloat16)
    h = jnp.einsum("bsh,hk->bsk", x, w,
                   preferred_element_type=jnp.float32) + bias
    h = h + input_tensor
    scale, zp = qparams[0], qparams[1]
    q = jnp.clip(jnp.round(h / scale + zp), QMIN, QMAX)
    h = (q - zp) * scale
    mean = jnp.mean(h, axis=-1, keepdims=True)
    var = jnp.mean((h - mean) ** 2, axis=-1, keepdims=True)
    return (h - mean) * jax.lax.rsqrt(var + LN_EPS) * gamma + beta


if __name__ == "__main__":
    B, S, H = 2, 8, 32  # batch, seq, hidden (small demo shapes)

    key = jax.random.PRNGKey(0)
    k1, k2, k3, k4, k5, k6 = jax.random.split(key, 6)

    hidden_states = jax.random.normal(k1, (B, S, H), dtype=jnp.float32)
    input_tensor = jax.random.normal(k2, (B, S, H), dtype=jnp.float32)

    # nn.Linear(H, H): weight (out, in), bias (out,) -- store transposed for kernel
    w_pt = jax.random.normal(k3, (H, H), dtype=jnp.float32) * (1.0 / jnp.sqrt(H))
    w_t = w_pt.T
    bias = jax.random.normal(k4, (H,), dtype=jnp.float32) * 0.1

    # LayerNorm(H) params
    gamma = 1.0 + 0.05 * jax.random.normal(k5, (H,), dtype=jnp.float32)
    beta = 0.05 * jax.random.normal(k6, (H,), dtype=jnp.float32)

    # fake-quant params (per-tensor affine, quint8): deterministic synthetic values
    qparams = jnp.array([0.05, 128.0], dtype=jnp.float32)  # [scale, zero_point]

    out = qaware_bert_self_output(hidden_states, input_tensor, w_t, bias,
                                  gamma, beta, qparams)
    jax.block_until_ready(out)

    ref = _reference(hidden_states, input_tensor, w_t, bias, gamma, beta, qparams)
    assert out.shape == (B, S, H)
    # Tolerance covers a rare quantization-boundary flip (round(h/scale) vs
    # round(h*inv_scale) / accumulation-order) whose post-LayerNorm effect is
    # ~scale/std ~= 0.04; away from boundaries the match is ~1e-6.
    assert jnp.allclose(out, ref, atol=5e-2, rtol=0.0), "mismatch vs reference"
    assert float(jnp.mean(jnp.abs(out - ref))) < 1e-3, "mean error too large"

    print("KERNEL_OK")
</pallas_src>

<mosaic_0001>
module attributes {stable_mosaic.version = 11 : i64} {
  func.func @_self_output_kernel(%arg0: i32, %arg1: memref<256x32xbf16, #tpu.memory_space<vmem>>, %arg2: memref<256x32xf32, #tpu.memory_space<vmem>>, %arg3: memref<32x32xbf16, #tpu.memory_space<vmem>>, %arg4: memref<1x32xf32, #tpu.memory_space<vmem>>, %arg5: memref<1x32xf32, #tpu.memory_space<vmem>>, %arg6: memref<1x32xf32, #tpu.memory_space<vmem>>, %arg7: memref<2xf32, #tpu.memory_space<smem>>, %arg8: memref<256x32xf32, #tpu.memory_space<vmem>>) attributes {dimension_semantics = [#tpu.dimension_semantics<parallel>], iteration_bounds = array<i64: 1>, scalar_prefetch = 0 : i64, scratch_operands = 0 : i64, tpu.core_type = #tpu.core_type<tc>, window_params = [{transform_indices = @transform_0, window_bounds = array<i64: 256, 32>}, {transform_indices = @transform_1, window_bounds = array<i64: 256, 32>}, {pipeline_mode = #tpu.pipeline_mode<synchronous>, transform_indices = @transform_2, window_bounds = array<i64: 32, 32>}, {pipeline_mode = #tpu.pipeline_mode<synchronous>, transform_indices = @transform_3, window_bounds = array<i64: 1, 32>}, {pipeline_mode = #tpu.pipeline_mode<synchronous>, transform_indices = @transform_4, window_bounds = array<i64: 1, 32>}, {pipeline_mode = #tpu.pipeline_mode<synchronous>, transform_indices = @transform_5, window_bounds = array<i64: 1, 32>}, {transform_indices = @transform_6, window_bounds = array<i64: 2>}, {transform_indices = @transform_7, window_bounds = array<i64: 256, 32>}]} {
    %c0 = arith.constant 0 : index
    %c0_0 = arith.constant 0 : index
    %0 = vector.load %arg1[%c0, %c0_0] : memref<256x32xbf16, #tpu.memory_space<vmem>>, vector<256x32xbf16>
    %c0_1 = arith.constant 0 : index
    %c0_2 = arith.constant 0 : index
    %1 = vector.load %arg3[%c0_1, %c0_2] : memref<32x32xbf16, #tpu.memory_space<vmem>>, vector<32x32xbf16>
    %cst = arith.constant dense<0.000000e+00> : vector<256x32xf32>
    %2 = tpu.matmul %0, %1, %cst {dimension_numbers = #tpu.dot_dimension_numbers<[1], [0], [0], [1], [0, 0, 1, 1], [], []>} : vector<256x32xbf16>, vector<32x32xbf16>, vector<256x32xf32> -> vector<256x32xf32>
    %c0_3 = arith.constant 0 : index
    %c0_4 = arith.constant 0 : index
    %3 = vector.load %arg4[%c0_3, %c0_4] : memref<1x32xf32, #tpu.memory_space<vmem>>, vector<1x32xf32>
    %4 = vector.broadcast %3 : vector<1x32xf32> to vector<256x32xf32>
    %5 = arith.addf %2, %4 : vector<256x32xf32>
    %c0_5 = arith.constant 0 : index
    %c0_6 = arith.constant 0 : index
    %6 = vector.load %arg2[%c0_5, %c0_6] : memref<256x32xf32, #tpu.memory_space<vmem>>, vector<256x32xf32>
    %7 = arith.addf %5, %6 : vector<256x32xf32>
    %c0_7 = arith.constant 0 : index
    %8 = memref.load %arg7[%c0_7] : memref<2xf32, #tpu.memory_space<smem>>
    %c1 = arith.constant 1 : index
    %9 = memref.load %arg7[%c1] : memref<2xf32, #tpu.memory_space<smem>>
    %cst_8 = arith.constant 1.000000e+00 : f32
    %10 = arith.divf %cst_8, %8 : f32
    %11 = vector.broadcast %10 : f32 to vector<256x32xf32>
    %12 = arith.mulf %7, %11 : vector<256x32xf32>
    %13 = vector.broadcast %9 : f32 to vector<256x32xf32>
    %14 = arith.addf %12, %13 : vector<256x32xf32>
    %15 = math.roundeven %14 : vector<256x32xf32>
    %cst_9 = arith.constant 0.000000e+00 : f32
    %cst_10 = arith.constant 2.550000e+02 : f32
    %16 = vector.broadcast %cst_9 : f32 to vector<256x32xf32>
    %17 = arith.maximumf %16, %15 : vector<256x32xf32>
    %18 = vector.broadcast %cst_10 : f32 to vector<256x32xf32>
    %19 = arith.minimumf %18, %17 : vector<256x32xf32>
    %20 = vector.broadcast %9 : f32 to vector<256x32xf32>
    %21 = arith.subf %19, %20 : vector<256x32xf32>
    %22 = vector.broadcast %8 : f32 to vector<256x32xf32>
    %23 = arith.mulf %21, %22 : vector<256x32xf32>
    %cst_11 = arith.constant dense<0.000000e+00> : vector<256xf32>
    %24 = vector.multi_reduction <add>, %23, %cst_11 [1] : vector<256x32xf32> to vector<256xf32>
    %25 = vector.shape_cast %24 : vector<256xf32> to vector<256x1xf32>
    %26 = arith.mulf %23, %23 : vector<256x32xf32>
    %cst_12 = arith.constant dense<0.000000e+00> : vector<256xf32>
    %27 = vector.multi_reduction <add>, %26, %cst_12 [1] : vector<256x32xf32> to vector<256xf32>
    %28 = vector.shape_cast %27 : vector<256xf32> to vector<256x1xf32>
    %cst_13 = arith.constant 3.125000e-02 : f32
    %29 = vector.broadcast %cst_13 : f32 to vector<256x1xf32>
    %30 = arith.mulf %25, %29 : vector<256x1xf32>
    %cst_14 = arith.constant 3.125000e-02 : f32
    %31 = vector.broadcast %cst_14 : f32 to vector<256x1xf32>
    %32 = arith.mulf %28, %31 : vector<256x1xf32>
    %33 = arith.mulf %30, %30 : vector<256x1xf32>
    %34 = arith.subf %32, %33 : vector<256x1xf32>
    %cst_15 = arith.constant 0.000000e+00 : f32
    %35 = vector.broadcast %cst_15 : f32 to vector<256x1xf32>
    %36 = arith.maximumf %34, %35 : vector<256x1xf32>
    %37 = vector.broadcast %30 : vector<256x1xf32> to vector<256x32xf32>
    %38 = arith.subf %23, %37 : vector<256x32xf32>
    %cst_16 = arith.constant 9.99999996E-13 : f32
    %39 = vector.broadcast %cst_16 : f32 to vector<256x1xf32>
    %40 = arith.addf %36, %39 : vector<256x1xf32>
    %41 = math.rsqrt %40 : vector<256x1xf32>
    %42 = vector.broadcast %41 : vector<256x1xf32> to vector<256x32xf32>
    %43 = arith.mulf %38, %42 : vector<256x32xf32>
    %c0_17 = arith.constant 0 : index
    %c0_18 = arith.constant 0 : index
    %44 = vector.load %arg5[%c0_17, %c0_18] : memref<1x32xf32, #tpu.memory_space<vmem>>, vector<1x32xf32>
    %45 = vector.broadcast %44 : vector<1x32xf32> to vector<256x32xf32>
    %46 = arith.mulf %43, %45 : vector<256x32xf32>
    %c0_19 = arith.constant 0 : index
    %c0_20 = arith.constant 0 : index
    %47 = vector.load %arg6[%c0_19, %c0_20] : memref<1x32xf32, #tpu.memory_space<vmem>>, vector<1x32xf32>
    %48 = vector.broadcast %47 : vector<1x32xf32> to vector<256x32xf32>
    %49 = arith.addf %46, %48 : vector<256x32xf32>
    %c0_21 = arith.constant 0 : index
    %c0_22 = arith.constant 0 : index
    %50 = vector.load %arg8[%c0_21, %c0_22] : memref<256x32xf32, #tpu.memory_space<vmem>>, vector<256x32xf32>
    tpu.vector_store %arg8[%c0_21, %c0_22], %49 {strides = array<i32>} : memref<256x32xf32, #tpu.memory_space<vmem>>, vector<256x32xf32>,
    return
  }
  func.func @transform_0(%arg0: i32) -> (i32, i32) {
    %c0_i32 = arith.constant 0 : i32
    %c0_i32_0 = arith.constant 0 : i32
    return %arg0, %c0_i32 : i32, i32
  }
  func.func @transform_1(%arg0: i32) -> (i32, i32) {
    %c0_i32 = arith.constant 0 : i32
    %c0_i32_0 = arith.constant 0 : i32
    return %arg0, %c0_i32 : i32, i32
  }
  func.func @transform_2(%arg0: i32) -> (i32, i32) {
    %c0_i32 = arith.constant 0 : i32
    %c0_i32_0 = arith.constant 0 : i32
    %c0_i32_1 = arith.constant 0 : i32
    return %c0_i32, %c0_i32_0 : i32, i32
  }
  func.func @transform_3(%arg0: i32) -> (i32, i32) {
    %c0_i32 = arith.constant 0 : i32
    %c0_i32_0 = arith.constant 0 : i32
    %c0_i32_1 = arith.constant 0 : i32
    return %c0_i32, %c0_i32_0 : i32, i32
  }
  func.func @transform_4(%arg0: i32) -> (i32, i32) {
    %c0_i32 = arith.constant 0 : i32
    %c0_i32_0 = arith.constant 0 : i32
    %c0_i32_1 = arith.constant 0 : i32
    return %c0_i32, %c0_i32_0 : i32, i32
  }
  func.func @transform_5(%arg0: i32) -> (i32, i32) {
    %c0_i32 = arith.constant 0 : i32
    %c0_i32_0 = arith.constant 0 : i32
    %c0_i32_1 = arith.constant 0 : i32
    return %c0_i32, %c0_i32_0 : i32, i32
  }
  func.func @transform_6(%arg0: i32) -> i32 {
    %c0_i32 = arith.constant 0 : i32
    %c0_i32_0 = arith.constant 0 : i32
    return %c0_i32 : i32
  }
  func.func @transform_7(%arg0: i32) -> (i32, i32) {
    %c0_i32 = arith.constant 0 : i32
    %c0_i32_0 = arith.constant 0 : i32
    return %arg0, %c0_i32 : i32, i32
  }
}

</mosaic_0001>

<llo_original>
// kernel: qaware_bert_self_output.1
$region0: #{qaware_bert_self_output.1}
  #allocation0 [shape = 'u32[]', space=smem, size = 0x4, offset = 0x4, fixed_abs, tag = 'smem constant byte address 0x4 - core index']
  #allocation1 [shape = 'u32[72,128]{1,0:T(1,128)}', space=vmem, size = 0x9000, scoped, tag = 'internal scratch']
  %s0 = inlined_call_operand.vmem [shape: bf16[256,32], index: 0, kind: input, shape index: {}]
  %s1 = inlined_call_operand.vmem [shape: f32[256,32], index: 1, kind: input, shape index: {}]
  %s2 = inlined_call_operand.vmem [shape: bf16[32,32], index: 2, kind: input, shape index: {}]
  %s3 = inlined_call_operand.vmem [shape: f32[1,32], index: 3, kind: input, shape index: {}]
  %s4 = inlined_call_operand.vmem [shape: f32[1,32], index: 4, kind: input, shape index: {}]
  %s5 = inlined_call_operand.vmem [shape: f32[1,32], index: 5, kind: input, shape index: {}]
  %s6 = inlined_call_operand.vmem [shape: f32[2], index: 6, kind: input, shape index: {}]
  %s7 = inlined_call_operand.vmem [shape: f32[256,32], index: 7, kind: output, shape index: {}]
  %s8 = sld [smem:[#allocation0]]
  $region42: #{qaware_bert_self_output.1} parent=0
    _
  %s10 = ssub.s32 1, %s8
  %s11 = scalar_select 0, %s10, %s8
  $region1: #{qaware_bert_self_output.1} parent=0
    #allocation2 [shape = 'u8[512]{0}', space=smem, size = 0x200, scoped, tag = 'input window, operand 6, single buffered']
    #allocation3 [shape = 's32[1]{0}', space=sflag, size = 0x4, scoped, tag = 'scoped memory for qaware_bert_self_output.1']
    %12 = vsyncpa [#allocation3], 0
    // Predicated region
    $region2: #{qaware_bert_self_output.1} parent=1 // pred_check
      _
    $region3: #{qaware_bert_self_output.1} parent=1 // pred_check_branch
      %14 = sbr.rel (0) target = $region5
    $region4: #{qaware_bert_self_output.1} parent=1 // pred_region
      _
    $region5: #{qaware_bert_self_output.1} parent=1 // pred_fallthru
      _
    // Predicated region
    $region6: #{qaware_bert_self_output.1} parent=1 // pred_check
      _
    $region7: #{qaware_bert_self_output.1} parent=1 // pred_check_branch
      %16 = sbr.rel (0) target = $region9
    $region8: #{qaware_bert_self_output.1} parent=1 // pred_region
      _
    $region9: #{qaware_bert_self_output.1} parent=1 // pred_fallthru
      _
    // Predicated region
    $region10: #{qaware_bert_self_output.1} parent=1 // pred_check
      _
    $region11: #{qaware_bert_self_output.1} parent=1 // pred_check_branch
      %18 = sbr.rel (0) target = $region13
    $region12: #{qaware_bert_self_output.1} parent=1 // pred_region
      _
    $region13: #{qaware_bert_self_output.1} parent=1 // pred_fallthru
      _
    // Predicated region
    $region14: #{qaware_bert_self_output.1} parent=1 // pred_check
      _
    $region15: #{qaware_bert_self_output.1} parent=1 // pred_check_branch
      %20 = sbr.rel (0) target = $region17
    $region16: #{qaware_bert_self_output.1} parent=1 // pred_region
      _
    $region17: #{qaware_bert_self_output.1} parent=1 // pred_fallthru
      _
    // Predicated region
    $region18: #{qaware_bert_self_output.1} parent=1 // pred_check
      _
    $region19: #{qaware_bert_self_output.1} parent=1 // pred_check_branch
      %22 = sbr.rel (0) target = $region21
    $region20: #{qaware_bert_self_output.1} parent=1 // pred_region
      _
    $region21: #{qaware_bert_self_output.1} parent=1 // pred_fallthru
      _
    // Predicated region
    $region22: #{qaware_bert_self_output.1} parent=1 // pred_check
      _
    $region23: #{qaware_bert_self_output.1} parent=1 // pred_check_branch
      %24 = sbr.rel (0) target = $region25
    $region24: #{qaware_bert_self_output.1} parent=1 // pred_region
      _
    $region25: #{qaware_bert_self_output.1} parent=1 // pred_fallthru
      _
    // Predicated region
    $region26: #{qaware_bert_self_output.1} parent=1 // pred_check
      _
    $region27: #{qaware_bert_self_output.1} parent=1 // pred_check_branch
      %26 = sbr.rel (0) target = $region29
    $region28: #{qaware_bert_self_output.1} parent=1 // pred_region
      %28 = vsyncadd [#allocation3], 0
      %s30 = sshll.u32 %s6, 4
      %s31 = int_to_ptr.vmem [resolvable:$true] %s30
      %33 = dma.vmem_to_smem %s31, 16, [#allocation2], [#allocation3]
    $region29: #{qaware_bert_self_output.1} parent=1 // pred_fallthru
      _
    // Predicated region
    $region30: #{qaware_bert_self_output.1} parent=1 // pred_check
      _
    $region31: #{qaware_bert_self_output.1} parent=1 // pred_check_branch
      %35 = sbr.rel (0) target = $region33
    $region32: #{qaware_bert_self_output.1} parent=1 // pred_region
      %37 = dma.done [#allocation3], 16
    $region33: #{qaware_bert_self_output.1} parent=1 // pred_fallthru
      _
    %38 = sfence
    %v40 = vld [vmem:[%s0] sm:$0xf]
    %v41 = vld [vmem:[%s0 + $0x4] sm:$0xf]
    %v42 = vld [vmem:[%s0 + $0x8] sm:$0xf]
    %v43 = vld [vmem:[%s0 + $0xc] sm:$0xf]
    %v44 = vld [vmem:[%s0 + $0x10] sm:$0xf]
    %v45 = vld [vmem:[%s0 + $0x14] sm:$0xf]
    %v46 = vld [vmem:[%s0 + $0x18] sm:$0xf]
    %v47 = vld [vmem:[%s0 + $0x1c] sm:$0xf]
    %v48 = vld [vmem:[%s0 + $0x20] sm:$0xf]
    %v49 = vld [vmem:[%s0 + $0x24] sm:$0xf]
    %v50 = vld [vmem:[%s0 + $0x28] sm:$0xf]
    %v51 = vld [vmem:[%s0 + $0x2c] sm:$0xf]
    %v52 = vld [vmem:[%s0 + $0x30] sm:$0xf]
    %v53 = vld [vmem:[%s0 + $0x34] sm:$0xf]
    %v54 = vld [vmem:[%s0 + $0x38] sm:$0xf]
    %v55 = vld [vmem:[%s0 + $0x3c] sm:$0xf]
    %v56 = vld [vmem:[%s0 + $0x40] sm:$0xf]
    %v57 = vld [vmem:[%s0 + $0x44] sm:$0xf]
    %v58 = vld [vmem:[%s0 + $0x48] sm:$0xf]
    %v59 = vld [vmem:[%s0 + $0x4c] sm:$0xf]
    %v60 = vld [vmem:[%s0 + $0x50] sm:$0xf]
    %v61 = vld [vmem:[%s0 + $0x54] sm:$0xf]
    %v62 = vld [vmem:[%s0 + $0x58] sm:$0xf]
    %v63 = vld [vmem:[%s0 + $0x5c] sm:$0xf]
    %v64 = vld [vmem:[%s0 + $0x60] sm:$0xf]
    %v65 = vld [vmem:[%s0 + $0x64] sm:$0xf]
    %v66 = vld [vmem:[%s0 + $0x68] sm:$0xf]
    %v67 = vld [vmem:[%s0 + $0x6c] sm:$0xf]
    %v68 = vld [vmem:[%s0 + $0x70] sm:$0xf]
    %v69 = vld [vmem:[%s0 + $0x74] sm:$0xf]
    %v70 = vld [vmem:[%s0 + $0x78] sm:$0xf]
    %v71 = vld [vmem:[%s0 + $0x7c] sm:$0xf]
    %v72 = vld [vmem:[%s2] sm:$0xf]
    %v73 = vld [vmem:[%s2 + $0x4] sm:$0xf]
    %v74 = vld [vmem:[%s2 + $0x8] sm:$0xf]
    %v75 = vld [vmem:[%s2 + $0xc] sm:$0xf]
    %v76 = vld [vmem:[%s3] sm:$0x1]
    %v78 = vperm.slane %v76, 0
    %v112 = vunpack.c.l.b16 %v40
    %v113 = vunpack.c.l.b16 %v41
    %v114 = vunpack.c.l.b16 %v42
    %v115 = vunpack.c.l.b16 %v43
    %v116 = vunpack.c.l.b16 %v44
    %v117 = vunpack.c.l.b16 %v45
    %v118 = vunpack.c.l.b16 %v46
    %v119 = vunpack.c.l.b16 %v47
    %v120 = vunpack.c.l.b16 %v48
    %v121 = vunpack.c.l.b16 %v49
    %v122 = vunpack.c.l.b16 %v50
    %v123 = vunpack.c.l.b16 %v51
    %v124 = vunpack.c.l.b16 %v52
    %v125 = vunpack.c.l.b16 %v53
    %v126 = vunpack.c.l.b16 %v54
    %v127 = vunpack.c.l.b16 %v55
    %v128 = vunpack.c.l.b16 %v56
    %v129 = vunpack.c.l.b16 %v57
    %v130 = vunpack.c.l.b16 %v58
    %v131 = vunpack.c.l.b16 %v59
    %v132 = vunpack.c.l.b16 %v60
    %v133 = vunpack.c.l.b16 %v61
    %v134 = vunpack.c.l.b16 %v62
    %v135 = vunpack.c.l.b16 %v63
    %v136 = vunpack.c.l.b16 %v64
    %v137 = vunpack.c.l.b16 %v65
    %v138 = vunpack.c.l.b16 %v66
    %v139 = vunpack.c.l.b16 %v67
    %v140 = vunpack.c.l.b16 %v68
    %v141 = vunpack.c.l.b16 %v69
    %v142 = vunpack.c.l.b16 %v70
    %v143 = vunpack.c.l.b16 %v71
    %v144 = vpack.c.b16 %v113, %v112
    %v145 = vpack.c.b16 %v115, %v114
    %v146 = vpack.c.b16 %v117, %v116
    %v147 = vpack.c.b16 %v119, %v118
    %v148 = vpack.c.b16 %v121, %v120
    %v149 = vpack.c.b16 %v123, %v122
    %v150 = vpack.c.b16 %v125, %v124
    %v151 = vpack.c.b16 %v127, %v126
    %v152 = vpack.c.b16 %v129, %v128
    %v153 = vpack.c.b16 %v131, %v130
    %v154 = vpack.c.b16 %v133, %v132
    %v155 = vpack.c.b16 %v135, %v134
    %v156 = vpack.c.b16 %v137, %v136
    %v157 = vpack.c.b16 %v139, %v138
    %v158 = vpack.c.b16 %v141, %v140
    %v159 = vpack.c.b16 %v143, %v142
    %v164 = vunpack.c.l.b16 %v72
    %v165 = vunpack.c.l.b16 %v73
    %v166 = vunpack.c.l.b16 %v74
    %v167 = vunpack.c.l.b16 %v75
    %v168 = vpack.c.b16 %v165, %v164
    %v169 = vpack.c.b16 %v167, %v166
    %vm172 = vcmask 261120
    %v174 = vsel %vm172, %v144, 0
    %v177 = vsel %vm172, %v145, 0
    %v180 = vsel %vm172, %v146, 0
    %v183 = vsel %vm172, %v147, 0
    %v186 = vsel %vm172, %v148, 0
    %v189 = vsel %vm172, %v149, 0
    %v192 = vsel %vm172, %v150, 0
    %v195 = vsel %vm172, %v151, 0
    %v198 = vsel %vm172, %v152, 0
    %v201 = vsel %vm172, %v153, 0
    %v204 = vsel %vm172, %v154, 0
    %v207 = vsel %vm172, %v155, 0
    %v210 = vsel %vm172, %v156, 0
    %v213 = vsel %vm172, %v157, 0
    %v216 = vsel %vm172, %v158, 0
    %v219 = vsel %vm172, %v159, 0
    %221 = vmatpush.bf16.msra.mxu0 0
    %222 = vmatpush.bf16.msra.mxu0 0
    %223 = vmatpush.bf16.msra.mxu0 0
    %224 = vmatpush.bf16.msra.mxu0 0
    %225 = vmatpush.bf16.msra.mxu0 0
    %226 = vmatpush.bf16.msra.mxu0 0
    %227 = vmatpush.bf16.msra.mxu0 %v169
    %228 = vmatpush.bf16.msra.mxu0 %v168
    %229 = vmatmul.bf16.gmra.mxu0 %v174
    %v230 = vpop.f32.mrf.mxu0
    %v231 = vadd.f32 %v78, %v230
    %v232 = vpop.f32.mrf.mxu0
    %v233 = vadd.f32 %v78, %v232
    %234 = vmatmul.bf16.gmra.mxu0 %v177
    %v235 = vpop.f32.mrf.mxu0
    %v236 = vadd.f32 %v78, %v235
    %v237 = vpop.f32.mrf.mxu0
    %v238 = vadd.f32 %v78, %v237
    %239 = vmatmul.bf16.gmra.mxu0 %v180
    %v240 = vpop.f32.mrf.mxu0
    %v241 = vadd.f32 %v78, %v240
    %v242 = vpop.f32.mrf.mxu0
    %v243 = vadd.f32 %v78, %v242
    %244 = vmatmul.bf16.gmra.mxu0 %v183
    %v245 = vpop.f32.mrf.mxu0
    %v246 = vadd.f32 %v78, %v245
    %v247 = vpop.f32.mrf.mxu0
    %v248 = vadd.f32 %v78, %v247
    %249 = vmatmul.bf16.gmra.mxu0 %v186
    %v250 = vpop.f32.mrf.mxu0
    %v251 = vadd.f32 %v78, %v250
    %v252 = vpop.f32.mrf.mxu0
    %v253 = vadd.f32 %v78, %v252
    %254 = vmatmul.bf16.gmra.mxu0 %v189
    %v255 = vpop.f32.mrf.mxu0
    %v256 = vadd.f32 %v78, %v255
    %v257 = vpop.f32.mrf.mxu0
    %v258 = vadd.f32 %v78, %v257
    %259 = vmatmul.bf16.gmra.mxu0 %v192
    %v260 = vpop.f32.mrf.mxu0
    %v261 = vadd.f32 %v78, %v260
    %v262 = vpop.f32.mrf.mxu0
    %v263 = vadd.f32 %v78, %v262
    %264 = vmatmul.bf16.gmra.mxu0 %v195
    %v265 = vpop.f32.mrf.mxu0
    %v266 = vadd.f32 %v78, %v265
    %v267 = vpop.f32.mrf.mxu0
    %v268 = vadd.f32 %v78, %v267
    %269 = vmatmul.bf16.gmra.mxu0 %v198
    %v270 = vpop.f32.mrf.mxu0
    %v271 = vadd.f32 %v78, %v270
    %v272 = vpop.f32.mrf.mxu0
    %v273 = vadd.f32 %v78, %v272
    %274 = vmatmul.bf16.gmra.mxu0 %v201
    %v275 = vpop.f32.mrf.mxu0
    %v276 = vadd.f32 %v78, %v275
    %v277 = vpop.f32.mrf.mxu0
    %v278 = vadd.f32 %v78, %v277
    %279 = vmatmul.bf16.gmra.mxu0 %v204
    %v280 = vpop.f32.mrf.mxu0
    %v281 = vadd.f32 %v78, %v280
    %v282 = vpop.f32.mrf.mxu0
    %v283 = vadd.f32 %v78, %v282
    %284 = vmatmul.bf16.gmra.mxu0 %v207
    %v285 = vpop.f32.mrf.mxu0
    %v286 = vadd.f32 %v78, %v285
    %v287 = vpop.f32.mrf.mxu0
    %v288 = vadd.f32 %v78, %v287
    %289 = vmatmul.bf16.gmra.mxu0 %v210
    %v290 = vpop.f32.mrf.mxu0
    %v291 = vadd.f32 %v78, %v290
    %v292 = vpop.f32.mrf.mxu0
    %v293 = vadd.f32 %v78, %v292
    %294 = vmatmul.bf16.gmra.mxu0 %v213
    %v295 = vpop.f32.mrf.mxu0
    %v296 = vadd.f32 %v78, %v295
    %v297 = vpop.f32.mrf.mxu0
    %v298 = vadd.f32 %v78, %v297
    %299 = vmatmul.bf16.gmra.mxu0 %v216
    %v300 = vpop.f32.mrf.mxu0
    %v301 = vadd.f32 %v78, %v300
    %v302 = vpop.f32.mrf.mxu0
    %v303 = vadd.f32 %v78, %v302
    %304 = vmatmul.bf16.gmra.mxu0 %v219
    %v305 = vpop.f32.mrf.mxu0
    %v306 = vadd.f32 %v78, %v305
    %v307 = vpop.f32.mrf.mxu0
    %v308 = vadd.f32 %v78, %v307
    %309 = vdwg.mxu0
    %v310 = vld [vmem:[%s1] sm:$0xff]
    %v311 = vld [vmem:[%s1 + $0x8] sm:$0xff]
    %v312 = vld [vmem:[%s1 + $0x10] sm:$0xff]
    %v313 = vld [vmem:[%s1 + $0x18] sm:$0xff]
    %v314 = vld [vmem:[%s1 + $0x20] sm:$0xff]
    %v315 = vld [vmem:[%s1 + $0x28] sm:$0xff]
    %v316 = vld [vmem:[%s1 + $0x30] sm:$0xff]
    %v317 = vld [vmem:[%s1 + $0x38] sm:$0xff]
    %v318 = vld [vmem:[%s1 + $0x40] sm:$0xff]
    %v319 = vld [vmem:[%s1 + $0x48] sm:$0xff]
    %v320 = vld [vmem:[%s1 + $0x50] sm:$0xff]
    %v321 = vld [vmem:[%s1 + $0x58] sm:$0xff]
    %v322 = vld [vmem:[%s1 + $0x60] sm:$0xff]
    %v323 = vld [vmem:[%s1 + $0x68] sm:$0xff]
    %v324 = vld [vmem:[%s1 + $0x70] sm:$0xff]
    %v325 = vld [vmem:[%s1 + $0x78] sm:$0xff]
    %v326 = vld [vmem:[%s1 + $0x80] sm:$0xff]
    %v327 = vld [vmem:[%s1 + $0x88] sm:$0xff]
    %v328 = vld [vmem:[%s1 + $0x90] sm:$0xff]
    %v329 = vld [vmem:[%s1 + $0x98] sm:$0xff]
    %v330 = vld [vmem:[%s1 + $0xa0] sm:$0xff]
    %v331 = vld [vmem:[%s1 + $0xa8] sm:$0xff]
    %v332 = vld [vmem:[%s1 + $0xb0] sm:$0xff]
    %v333 = vld [vmem:[%s1 + $0xb8] sm:$0xff]
    %v334 = vld [vmem:[%s1 + $0xc0] sm:$0xff]
    %v335 = vld [vmem:[%s1 + $0xc8] sm:$0xff]
    %v336 = vld [vmem:[%s1 + $0xd0] sm:$0xff]
    %v337 = vld [vmem:[%s1 + $0xd8] sm:$0xff]
    %v338 = vld [vmem:[%s1 + $0xe0] sm:$0xff]
    %v339 = vld [vmem:[%s1 + $0xe8] sm:$0xff]
    %v340 = vld [vmem:[%s1 + $0xf0] sm:$0xff]
    %v341 = vld [vmem:[%s1 + $0xf8] sm:$0xff]
    %v342 = vadd.f32 %v231, %v310
    %v343 = vadd.f32 %v233, %v311
    %v344 = vadd.f32 %v236, %v312
    %v345 = vadd.f32 %v238, %v313
    %v346 = vadd.f32 %v241, %v314
    %v347 = vadd.f32 %v243, %v315
    %v348 = vadd.f32 %v246, %v316
    %v349 = vadd.f32 %v248, %v317
    %v350 = vadd.f32 %v251, %v318
    %v351 = vadd.f32 %v253, %v319
    %v352 = vadd.f32 %v256, %v320
    %v353 = vadd.f32 %v258, %v321
    %v354 = vadd.f32 %v261, %v322
    %v355 = vadd.f32 %v263, %v323
    %v356 = vadd.f32 %v266, %v324
    %v357 = vadd.f32 %v268, %v325
    %v358 = vadd.f32 %v271, %v326
    %v359 = vadd.f32 %v273, %v327
    %v360 = vadd.f32 %v276, %v328
    %v361 = vadd.f32 %v278, %v329
    %v362 = vadd.f32 %v281, %v330
    %v363 = vadd.f32 %v283, %v331
    %v364 = vadd.f32 %v286, %v332
    %v365 = vadd.f32 %v288, %v333
    %v366 = vadd.f32 %v291, %v334
    %v367 = vadd.f32 %v293, %v335
    %v368 = vadd.f32 %v296, %v336
    %v369 = vadd.f32 %v298, %v337
    %v370 = vadd.f32 %v301, %v338
    %v371 = vadd.f32 %v303, %v339
    %v372 = vadd.f32 %v306, %v340
    %v373 = vadd.f32 %v308, %v341
    %s374 = sld [smem:[#allocation2]]
    %s375 = sld [smem:[#allocation2 + $0x1]]
    %v376 = vstv %s374
    %v377 = vrcp.pop %v376
    %v378 = vmul.f32 %v376, %v377
    %v379 = vsub.f32 1.0, %v378
    %v380 = vmul.f32 %v377, %v379
    %v381 = vadd.f32 %v377, %v380
    %vm382 = vweird.f32 %v376
    %vm383 = vweird.f32 %v377
    %vm384 = vmor %vm382, %vm383
    %v385 = vsel %vm384, %v377, %v381
    %v386 = vand.u32 2147483647, %v376
    %vm387 = vcmp.eq.f32.partialorder %v386, 8.507059e+37
    %v388 = vand.u32 %v376, 2147483648
    %v389 = vor.u32 1.1754944e-38, %v388
    %v390 = vsel %vm387, %v389, %v385
    %s391 = vtos %v390
    %v392 = vstv %s391
    %v393 = vmul.f32 %v342, %v392
    %v394 = vmul.f32 %v343, %v392
    %v395 = vmul.f32 %v344, %v392
    %v396 = vmul.f32 %v345, %v392
    %v397 = vmul.f32 %v346, %v392
    %v398 = vmul.f32 %v347, %v392
    %v399 = vmul.f32 %v348, %v392
    %v400 = vmul.f32 %v349, %v392
    %v401 = vmul.f32 %v350, %v392
    %v402 = vmul.f32 %v351, %v392
    %v403 = vmul.f32 %v352, %v392
    %v404 = vmul.f32 %v353, %v392
    %v405 = vmul.f32 %v354, %v392
    %v406 = vmul.f32 %v355, %v392
    %v407 = vmul.f32 %v356, %v392
    %v408 = vmul.f32 %v357, %v392
    %v409 = vmul.f32 %v358, %v392
    %v410 = vmul.f32 %v359, %v392
    %v411 = vmul.f32 %v360, %v392
    %v412 = vmul.f32 %v361, %v392
    %v413 = vmul.f32 %v362, %v392
    %v414 = vmul.f32 %v363, %v392
    %v415 = vmul.f32 %v364, %v392
    %v416 = vmul.f32 %v365, %v392
    %v417 = vmul.f32 %v366, %v392
    %v418 = vmul.f32 %v367, %v392
    %v419 = vmul.f32 %v368, %v392
    %v420 = vmul.f32 %v369, %v392
    %v421 = vmul.f32 %v370, %v392
    %v422 = vmul.f32 %v371, %v392
    %v423 = vmul.f32 %v372, %v392
    %v424 = vmul.f32 %v373, %v392
    %v425 = vstv %s375
    %v426 = vadd.f32 %v393, %v425
    %v427 = vadd.f32 %v394, %v425
    %v428 = vadd.f32 %v395, %v425
    %v429 = vadd.f32 %v396, %v425
    %v430 = vadd.f32 %v397, %v425
    %v431 = vadd.f32 %v398, %v425
    %v432 = vadd.f32 %v399, %v425
    %v433 = vadd.f32 %v400, %v425
    %v434 = vadd.f32 %v401, %v425
    %v435 = vadd.f32 %v402, %v425
    %v436 = vadd.f32 %v403, %v425
    %v437 = vadd.f32 %v404, %v425
    %v438 = vadd.f32 %v405, %v425
    %v439 = vadd.f32 %v406, %v425
    %v440 = vadd.f32 %v407, %v425
    %v441 = vadd.f32 %v408, %v425
    %v442 = vadd.f32 %v409, %v425
    %v443 = vadd.f32 %v410, %v425
    %v444 = vadd.f32 %v411, %v425
    %v445 = vadd.f32 %v412, %v425
    %v446 = vadd.f32 %v413, %v425
    %v447 = vadd.f32 %v414, %v425
    %v448 = vadd.f32 %v415, %v425
    %v449 = vadd.f32 %v416, %v425
    %v450 = vadd.f32 %v417, %v425
    %v451 = vadd.f32 %v418, %v425
    %v452 = vadd.f32 %v419, %v425
    %v453 = vadd.f32 %v420, %v425
    %v454 = vadd.f32 %v421, %v425
    %v455 = vadd.f32 %v422, %v425
    %v456 = vadd.f32 %v423, %v425
    %v457 = vadd.f32 %v424, %v425
    %v458 = vround.ne.pseudo %v426
    %v459 = vround.ne.pseudo %v427
    %v460 = vround.ne.pseudo %v428
    %v461 = vround.ne.pseudo %v429
    %v462 = vround.ne.pseudo %v430
    %v463 = vround.ne.pseudo %v431
    %v464 = vround.ne.pseudo %v432
    %v465 = vround.ne.pseudo %v433
    %v466 = vround.ne.pseudo %v434
    %v467 = vround.ne.pseudo %v435
    %v468 = vround.ne.pseudo %v436
    %v469 = vround.ne.pseudo %v437
    %v470 = vround.ne.pseudo %v438
    %v471 = vround.ne.pseudo %v439
    %v472 = vround.ne.pseudo %v440
    %v473 = vround.ne.pseudo %v441
    %v474 = vround.ne.pseudo %v442
    %v475 = vround.ne.pseudo %v443
    %v476 = vround.ne.pseudo %v444
    %v477 = vround.ne.pseudo %v445
    %v478 = vround.ne.pseudo %v446
    %v479 = vround.ne.pseudo %v447
    %v480 = vround.ne.pseudo %v448
    %v481 = vround.ne.pseudo %v449
    %v482 = vround.ne.pseudo %v450
    %v483 = vround.ne.pseudo %v451
    %v484 = vround.ne.pseudo %v452
    %v485 = vround.ne.pseudo %v453
    %v486 = vround.ne.pseudo %v454
    %v487 = vround.ne.pseudo %v455
    %v488 = vround.ne.pseudo %v456
    %v489 = vround.ne.pseudo %v457
    %v490 = vmax.f32 %v458, 0.0
    %v491 = vmax.f32 %v459, 0.0
    %v492 = vmax.f32 %v460, 0.0
    %v493 = vmax.f32 %v461, 0.0
    %v494 = vmax.f32 %v462, 0.0
    %v495 = vmax.f32 %v463, 0.0
    %v496 = vmax.f32 %v464, 0.0
    %v497 = vmax.f32 %v465, 0.0
    %v498 = vmax.f32 %v466, 0.0
    %v499 = vmax.f32 %v467, 0.0
    %v500 = vmax.f32 %v468, 0.0
    %v501 = vmax.f32 %v469, 0.0
    %v502 = vmax.f32 %v470, 0.0
    %v503 = vmax.f32 %v471, 0.0
    %v504 = vmax.f32 %v472, 0.0
    %v505 = vmax.f32 %v473, 0.0
    %v506 = vmax.f32 %v474, 0.0
    %v507 = vmax.f32 %v475, 0.0
    %v508 = vmax.f32 %v476, 0.0
    %v509 = vmax.f32 %v477, 0.0
    %v510 = vmax.f32 %v478, 0.0
    %v511 = vmax.f32 %v479, 0.0
    %v512 = vmax.f32 %v480, 0.0
    %v513 = vmax.f32 %v481, 0.0
    %v514 = vmax.f32 %v482, 0.0
    %v515 = vmax.f32 %v483, 0.0
    %v516 = vmax.f32 %v484, 0.0
    %v517 = vmax.f32 %v485, 0.0
    %v518 = vmax.f32 %v486, 0.0
    %v519 = vmax.f32 %v487, 0.0
    %v520 = vmax.f32 %v488, 0.0
    %v521 = vmax.f32 %v489, 0.0
    %v522 = vmin.f32 %v490, 255.0
    %v523 = vmin.f32 %v491, 255.0
    %v524 = vmin.f32 %v492, 255.0
    %v525 = vmin.f32 %v493, 255.0
    %v526 = vmin.f32 %v494, 255.0
    %v527 = vmin.f32 %v495, 255.0
    %v528 = vmin.f32 %v496, 255.0
    %v529 = vmin.f32 %v497, 255.0
    %v530 = vmin.f32 %v498, 255.0
    %v531 = vmin.f32 %v499, 255.0
    %v532 = vmin.f32 %v500, 255.0
    %v533 = vmin.f32 %v501, 255.0
    %v534 = vmin.f32 %v502, 255.0
    %v535 = vmin.f32 %v503, 255.0
    %v536 = vmin.f32 %v504, 255.0
    %v537 = vmin.f32 %v505, 255.0
    %v538 = vmin.f32 %v506, 255.0
    %v539 = vmin.f32 %v507, 255.0
    %v540 = vmin.f32 %v508, 255.0
    %v541 = vmin.f32 %v509, 255.0
    %v542 = vmin.f32 %v510, 255.0
    %v543 = vmin.f32 %v511, 255.0
    %v544 = vmin.f32 %v512, 255.0
    %v545 = vmin.f32 %v513, 255.0
    %v546 = vmin.f32 %v514, 255.0
    %v547 = vmin.f32 %v515, 255.0
    %v548 = vmin.f32 %v516, 255.0
    %v549 = vmin.f32 %v517, 255.0
    %v550 = vmin.f32 %v518, 255.0
    %v551 = vmin.f32 %v519, 255.0
    %v552 = vmin.f32 %v520, 255.0
    %v553 = vmin.f32 %v521, 255.0
    %v554 = vsub.f32 %v522, %v425
    %v555 = vsub.f32 %v523, %v425
    %v556 = vsub.f32 %v524, %v425
    %v557 = vsub.f32 %v525, %v425
    %v558 = vsub.f32 %v526, %v425
    %v559 = vsub.f32 %v527, %v425
    %v560 = vsub.f32 %v528, %v425
    %v561 = vsub.f32 %v529, %v425
    %v562 = vsub.f32 %v530, %v425
    %v563 = vsub.f32 %v531, %v425
    %v564 = vsub.f32 %v532, %v425
    %v565 = vsub.f32 %v533, %v425
    %v566 = vsub.f32 %v534, %v425
    %v567 = vsub.f32 %v535, %v425
    %v568 = vsub.f32 %v536, %v425
    %v569 = vsub.f32 %v537, %v425
    %v570 = vsub.f32 %v538, %v425
    %v571 = vsub.f32 %v539, %v425
    %v572 = vsub.f32 %v540, %v425
    %v573 = vsub.f32 %v541, %v425
    %v574 = vsub.f32 %v542, %v425
    %v575 = vsub.f32 %v543, %v425
    %v576 = vsub.f32 %v544, %v425
    %v577 = vsub.f32 %v545, %v425
    %v578 = vsub.f32 %v546, %v425
    %v579 = vsub.f32 %v547, %v425
    %v580 = vsub.f32 %v548, %v425
    %v581 = vsub.f32 %v549, %v425
    %v582 = vsub.f32 %v550, %v425
    %v583 = vsub.f32 %v551, %v425
    %v584 = vsub.f32 %v552, %v425
    %v585 = vsub.f32 %v553, %v425
    %v586 = vstv %s374
    %v587 = vmul.f32 %v554, %v586
    %v588 = vmul.f32 %v555, %v586
    %v589 = vmul.f32 %v556, %v586
    %v590 = vmul.f32 %v557, %v586
    %v591 = vmul.f32 %v558, %v586
    %v592 = vmul.f32 %v559, %v586
    %v593 = vmul.f32 %v560, %v586
    %v594 = vmul.f32 %v561, %v586
    %v595 = vmul.f32 %v562, %v586
    %v596 = vmul.f32 %v563, %v586
    %v597 = vmul.f32 %v564, %v586
    %v598 = vmul.f32 %v565, %v586
    %v599 = vmul.f32 %v566, %v586
    %v600 = vmul.f32 %v567, %v586
    %v601 = vmul.f32 %v568, %v586
    %v602 = vmul.f32 %v569, %v586
    %v603 = vmul.f32 %v570, %v586
    %v604 = vmul.f32 %v571, %v586
    %v605 = vmul.f32 %v572, %v586
    %v606 = vmul.f32 %v573, %v586
    %v607 = vmul.f32 %v574, %v586
    %v608 = vmul.f32 %v575, %v586
    %v609 = vmul.f32 %v576, %v586
    %v610 = vmul.f32 %v577, %v586
    %v611 = vmul.f32 %v578, %v586
    %v612 = vmul.f32 %v579, %v586
    %v613 = vmul.f32 %v580, %v586
    %v614 = vmul.f32 %v581, %v586
    %v615 = vmul.f32 %v582, %v586
    %v616 = vmul.f32 %v583, %v586
    %v617 = vmul.f32 %v584, %v586
    %v618 = vmul.f32 %v585, %v586
    %v619 = vsel %vm172, %v587, 0.0
    %620 = vadd.xlane.f32.xlu0 %v619
    %v621 = vpop.xlane.xlu0 %620
    %v622 = vsel %vm172, %v588, 0.0
    %623 = vadd.xlane.f32.xlu0 %v622
    %v624 = vpop.xlane.xlu0 %623
    %v625 = vsel %vm172, %v589, 0.0
    %626 = vadd.xlane.f32.xlu0 %v625
    %v627 = vpop.xlane.xlu0 %626
    %v628 = vsel %vm172, %v590, 0.0
    %629 = vadd.xlane.f32.xlu0 %v628
    %v630 = vpop.xlane.xlu0 %629
    %v631 = vsel %vm172, %v591, 0.0
    %632 = vadd.xlane.f32.xlu0 %v631
    %v633 = vpop.xlane.xlu0 %632
    %v634 = vsel %vm172, %v592, 0.0
    %635 = vadd.xlane.f32.xlu0 %v634
    %v636 = vpop.xlane.xlu0 %635
    %v637 = vsel %vm172, %v593, 0.0
    %638 = vadd.xlane.f32.xlu0 %v637
    %v639 = vpop.xlane.xlu0 %638
    %v640 = vsel %vm172, %v594, 0.0
    %641 = vadd.xlane.f32.xlu0 %v640
    %v642 = vpop.xlane.xlu0 %641
    %v643 = vsel %vm172, %v595, 0.0
    %644 = vadd.xlane.f32.xlu0 %v643
    %v645 = vpop.xlane.xlu0 %644
    %v646 = vsel %vm172, %v596, 0.0
    %647 = vadd.xlane.f32.xlu0 %v646
    %v648 = vpop.xlane.xlu0 %647
    %v649 = vsel %vm172, %v597, 0.0
    %650 = vadd.xlane.f32.xlu0 %v649
    %v651 = vpop.xlane.xlu0 %650
    %v652 = vsel %vm172, %v598, 0.0
    %653 = vadd.xlane.f32.xlu0 %v652
    %v654 = vpop.xlane.xlu0 %653
    %v655 = vsel %vm172, %v599, 0.0
    %656 = vadd.xlane.f32.xlu0 %v655
    %v657 = vpop.xlane.xlu0 %656
    %v658 = vsel %vm172, %v600, 0.0
    %659 = vadd.xlane.f32.xlu0 %v658
    %v660 = vpop.xlane.xlu0 %659
    %v661 = vsel %vm172, %v601, 0.0
    %662 = vadd.xlane.f32.xlu0 %v661
    %v663 = vpop.xlane.xlu0 %662
    %v664 = vsel %vm172, %v602, 0.0
    %665 = vadd.xlane.f32.xlu0 %v664
    %v666 = vpop.xlane.xlu0 %665
    %v667 = vsel %vm172, %v603, 0.0
    %668 = vadd.xlane.f32.xlu0 %v667
    %v669 = vpop.xlane.xlu0 %668
    %v670 = vsel %vm172, %v604, 0.0
    %671 = vadd.xlane.f32.xlu0 %v670
    %v672 = vpop.xlane.xlu0 %671
    %v673 = vsel %vm172, %v605, 0.0
    %674 = vadd.xlane.f32.xlu0 %v673
    %v675 = vpop.xlane.xlu0 %674
    %v676 = vsel %vm172, %v606, 0.0
    %677 = vadd.xlane.f32.xlu0 %v676
    %v678 = vpop.xlane.xlu0 %677
    %v679 = vsel %vm172, %v607, 0.0
    %680 = vadd.xlane.f32.xlu0 %v679
    %v681 = vpop.xlane.xlu0 %680
    %v682 = vsel %vm172, %v608, 0.0
    %683 = vadd.xlane.f32.xlu0 %v682
    %v684 = vpop.xlane.xlu0 %683
    %v685 = vsel %vm172, %v609, 0.0
    %686 = vadd.xlane.f32.xlu0 %v685
    %v687 = vpop.xlane.xlu0 %686
    %v688 = vsel %vm172, %v610, 0.0
    %689 = vadd.xlane.f32.xlu0 %v688
    %v690 = vpop.xlane.xlu0 %689
    %v691 = vsel %vm172, %v611, 0.0
    %692 = vadd.xlane.f32.xlu0 %v691
    %v693 = vpop.xlane.xlu0 %692
    %v694 = vsel %vm172, %v612, 0.0
    %695 = vadd.xlane.f32.xlu0 %v694
    %v696 = vpop.xlane.xlu0 %695
    %v697 = vsel %vm172, %v613, 0.0
    %698 = vadd.xlane.f32.xlu0 %v697
    %v699 = vpop.xlane.xlu0 %698
    %v700 = vsel %vm172, %v614, 0.0
    %701 = vadd.xlane.f32.xlu0 %v700
    %v702 = vpop.xlane.xlu0 %701
    %v703 = vsel %vm172, %v615, 0.0
    %704 = vadd.xlane.f32.xlu0 %v703
    %v705 = vpop.xlane.xlu0 %704
    %v706 = vsel %vm172, %v616, 0.0
    %707 = vadd.xlane.f32.xlu0 %v706
    %v708 = vpop.xlane.xlu0 %707
    %v709 = vsel %vm172, %v617, 0.0
    %710 = vadd.xlane.f32.xlu0 %v709
    %v711 = vpop.xlane.xlu0 %710
    %v712 = vsel %vm172, %v618, 0.0
    %713 = vadd.xlane.f32.xlu0 %v712
    %v714 = vpop.xlane.xlu0 %713
    %v715 = vmul.f32 %v587, %v587
    %v716 = vmul.f32 %v588, %v588
    %v717 = vmul.f32 %v589, %v589
    %v718 = vmul.f32 %v590, %v590
    %v719 = vmul.f32 %v591, %v591
    %v720 = vmul.f32 %v592, %v592
    %v721 = vmul.f32 %v593, %v593
    %v722 = vmul.f32 %v594, %v594
    %v723 = vmul.f32 %v595, %v595
    %v724 = vmul.f32 %v596, %v596
    %v725 = vmul.f32 %v597, %v597
    %v726 = vmul.f32 %v598, %v598
    %v727 = vmul.f32 %v599, %v599
    %v728 = vmul.f32 %v600, %v600
    %v729 = vmul.f32 %v601, %v601
    %v730 = vmul.f32 %v602, %v602
    %v731 = vmul.f32 %v603, %v603
    %v732 = vmul.f32 %v604, %v604
    %v733 = vmul.f32 %v605, %v605
    %v734 = vmul.f32 %v606, %v606
    %v735 = vmul.f32 %v607, %v607
    %v736 = vmul.f32 %v608, %v608
    %v737 = vmul.f32 %v609, %v609
    %v738 = vmul.f32 %v610, %v610
    %v739 = vmul.f32 %v611, %v611
    %v740 = vmul.f32 %v612, %v612
    %v741 = vmul.f32 %v613, %v613
    %v742 = vmul.f32 %v614, %v614
    %v743 = vmul.f32 %v615, %v615
    %v744 = vmul.f32 %v616, %v616
    %v745 = vmul.f32 %v617, %v617
    %v746 = vmul.f32 %v618, %v618
    %v747 = vsel %vm172, %v715, 0.0
    %748 = vadd.xlane.f32.xlu0 %v747
    %v749 = vpop.xlane.xlu0 %748
    %v750 = vsel %vm172, %v716, 0.0
    %751 = vadd.xlane.f32.xlu0 %v750
    %v752 = vpop.xlane.xlu0 %751
    %v753 = vsel %vm172, %v717, 0.0
    %754 = vadd.xlane.f32.xlu0 %v753
    %v755 = vpop.xlane.xlu0 %754
    %v756 = vsel %vm172, %v718, 0.0
    %757 = vadd.xlane.f32.xlu0 %v756
    %v758 = vpop.xlane.xlu0 %757
    %v759 = vsel %vm172, %v719, 0.0
    %760 = vadd.xlane.f32.xlu0 %v759
    %v761 = vpop.xlane.xlu0 %760
    %v762 = vsel %vm172, %v720, 0.0
    %763 = vadd.xlane.f32.xlu0 %v762
    %v764 = vpop.xlane.xlu0 %763
    %v765 = vsel %vm172, %v721, 0.0
    %766 = vadd.xlane.f32.xlu0 %v765
    %v767 = vpop.xlane.xlu0 %766
    %v768 = vsel %vm172, %v722, 0.0
    %769 = vadd.xlane.f32.xlu0 %v768
    %v770 = vpop.xlane.xlu0 %769
    %v771 = vsel %vm172, %v723, 0.0
    %772 = vadd.xlane.f32.xlu0 %v771
    %v773 = vpop.xlane.xlu0 %772
    %v774 = vsel %vm172, %v724, 0.0
    %775 = vadd.xlane.f32.xlu0 %v774
    %v776 = vpop.xlane.xlu0 %775
    %v777 = vsel %vm172, %v725, 0.0
    %778 = vadd.xlane.f32.xlu0 %v777
    %v779 = vpop.xlane.xlu0 %778
    %v780 = vsel %vm172, %v726, 0.0
    %781 = vadd.xlane.f32.xlu0 %v780
    %v782 = vpop.xlane.xlu0 %781
    %v783 = vsel %vm172, %v727, 0.0
    %784 = vadd.xlane.f32.xlu0 %v783
    %v785 = vpop.xlane.xlu0 %784
    %v786 = vsel %vm172, %v728, 0.0
    %787 = vadd.xlane.f32.xlu0 %v786
    %v788 = vpop.xlane.xlu0 %787
    %v789 = vsel %vm172, %v729, 0.0
    %790 = vadd.xlane.f32.xlu0 %v789
    %v791 = vpop.xlane.xlu0 %790
    %v792 = vsel %vm172, %v730, 0.0
    %793 = vadd.xlane.f32.xlu0 %v792
    %v794 = vpop.xlane.xlu0 %793
    %v795 = vsel %vm172, %v731, 0.0
    %796 = vadd.xlane.f32.xlu0 %v795
    %v797 = vpop.xlane.xlu0 %796
    %v798 = vsel %vm172, %v732, 0.0
    %799 = vadd.xlane.f32.xlu0 %v798
    %v800 = vpop.xlane.xlu0 %799
    %v801 = vsel %vm172, %v733, 0.0
    %802 = vadd.xlane.f32.xlu0 %v801
    %v803 = vpop.xlane.xlu0 %802
    %v804 = vsel %vm172, %v734, 0.0
    %805 = vadd.xlane.f32.xlu0 %v804
    %v806 = vpop.xlane.xlu0 %805
    %v807 = vsel %vm172, %v735, 0.0
    %808 = vadd.xlane.f32.xlu0 %v807
    %v809 = vpop.xlane.xlu0 %808
    %v810 = vsel %vm172, %v736, 0.0
    %811 = vadd.xlane.f32.xlu0 %v810
    %v812 = vpop.xlane.xlu0 %811
    %v813 = vsel %vm172, %v737, 0.0
    %814 = vadd.xlane.f32.xlu0 %v813
    %v815 = vpop.xlane.xlu0 %814
    %v816 = vsel %vm172, %v738, 0.0
    %817 = vadd.xlane.f32.xlu0 %v816
    %v818 = vpop.xlane.xlu0 %817
    %v819 = vsel %vm172, %v739, 0.0
    %820 = vadd.xlane.f32.xlu0 %v819
    %v821 = vpop.xlane.xlu0 %820
    %v822 = vsel %vm172, %v740, 0.0
    %823 = vadd.xlane.f32.xlu0 %v822
    %v824 = vpop.xlane.xlu0 %823
    %v825 = vsel %vm172, %v741, 0.0
    %826 = vadd.xlane.f32.xlu0 %v825
    %v827 = vpop.xlane.xlu0 %826
    %v828 = vsel %vm172, %v742, 0.0
    %829 = vadd.xlane.f32.xlu0 %v828
    %v830 = vpop.xlane.xlu0 %829
    %v831 = vsel %vm172, %v743, 0.0
    %832 = vadd.xlane.f32.xlu0 %v831
    %v833 = vpop.xlane.xlu0 %832
    %v834 = vsel %vm172, %v744, 0.0
    %835 = vadd.xlane.f32.xlu0 %v834
    %v836 = vpop.xlane.xlu0 %835
    %v837 = vsel %vm172, %v745, 0.0
    %838 = vadd.xlane.f32.xlu0 %v837
    %v839 = vpop.xlane.xlu0 %838
    %v840 = vsel %vm172, %v746, 0.0
    %841 = vadd.xlane.f32.xlu0 %v840
    %v842 = vpop.xlane.xlu0 %841
    %v843 = vmul.f32 %v621, 0.03125
    %v844 = vmul.f32 %v624, 0.03125
    %v845 = vmul.f32 %v627, 0.03125
    %v846 = vmul.f32 %v630, 0.03125
    %v847 = vmul.f32 %v633, 0.03125
    %v848 = vmul.f32 %v636, 0.03125
    %v849 = vmul.f32 %v639, 0.03125
    %v850 = vmul.f32 %v642, 0.03125
    %v851 = vmul.f32 %v645, 0.03125
    %v852 = vmul.f32 %v648, 0.03125
    %v853 = vmul.f32 %v651, 0.03125
    %v854 = vmul.f32 %v654, 0.03125
    %v855 = vmul.f32 %v657, 0.03125
    %v856 = vmul.f32 %v660, 0.03125
    %v857 = vmul.f32 %v663, 0.03125
    %v858 = vmul.f32 %v666, 0.03125
    %v859 = vmul.f32 %v669, 0.03125
    %v860 = vmul.f32 %v672, 0.03125
    %v861 = vmul.f32 %v675, 0.03125
    %v862 = vmul.f32 %v678, 0.03125
    %v863 = vmul.f32 %v681, 0.03125
    %v864 = vmul.f32 %v684, 0.03125
    %v865 = vmul.f32 %v687, 0.03125
    %v866 = vmul.f32 %v690, 0.03125
    %v867 = vmul.f32 %v693, 0.03125
    %v868 = vmul.f32 %v696, 0.03125
    %v869 = vmul.f32 %v699, 0.03125
    %v870 = vmul.f32 %v702, 0.03125
    %v871 = vmul.f32 %v705, 0.03125
    %v872 = vmul.f32 %v708, 0.03125
    %v873 = vmul.f32 %v711, 0.03125
    %v874 = vmul.f32 %v714, 0.03125
    %v875 = vmul.f32 %v749, 0.03125
    %v876 = vmul.f32 %v752, 0.03125
    %v877 = vmul.f32 %v755, 0.03125
    %v878 = vmul.f32 %v758, 0.03125
    %v879 = vmul.f32 %v761, 0.03125
    %v880 = vmul.f32 %v764, 0.03125
    %v881 = vmul.f32 %v767, 0.03125
    %v882 = vmul.f32 %v770, 0.03125
    %v883 = vmul.f32 %v773, 0.03125
    %v884 = vmul.f32 %v776, 0.03125
    %v885 = vmul.f32 %v779, 0.03125
    %v886 = vmul.f32 %v782, 0.03125
    %v887 = vmul.f32 %v785, 0.03125
    %v888 = vmul.f32 %v788, 0.03125
    %v889 = vmul.f32 %v791, 0.03125
    %v890 = vmul.f32 %v794, 0.03125
    %v891 = vmul.f32 %v797, 0.03125
    %v892 = vmul.f32 %v800, 0.03125
    %v893 = vmul.f32 %v803, 0.03125
    %v894 = vmul.f32 %v806, 0.03125
    %v895 = vmul.f32 %v809, 0.03125
    %v896 = vmul.f32 %v812, 0.03125
    %v897 = vmul.f32 %v815, 0.03125
    %v898 = vmul.f32 %v818, 0.03125
    %v899 = vmul.f32 %v821, 0.03125
    %v900 = vmul.f32 %v824, 0.03125
    %v901 = vmul.f32 %v827, 0.03125
    %v902 = vmul.f32 %v830, 0.03125
    %v903 = vmul.f32 %v833, 0.03125
    %v904 = vmul.f32 %v836, 0.03125
    %v905 = vmul.f32 %v839, 0.03125
    %v906 = vmul.f32 %v842, 0.03125
    %v907 = vmul.f32 %v843, %v843
    %v908 = vmul.f32 %v844, %v844
    %v909 = vmul.f32 %v845, %v845
    %v910 = vmul.f32 %v846, %v846
    %v911 = vmul.f32 %v847, %v847
    %v912 = vmul.f32 %v848, %v848
    %v913 = vmul.f32 %v849, %v849
    %v914 = vmul.f32 %v850, %v850
    %v915 = vmul.f32 %v851, %v851
    %v916 = vmul.f32 %v852, %v852
    %v917 = vmul.f32 %v853, %v853
    %v918 = vmul.f32 %v854, %v854
    %v919 = vmul.f32 %v855, %v855
    %v920 = vmul.f32 %v856, %v856
    %v921 = vmul.f32 %v857, %v857
    %v922 = vmul.f32 %v858, %v858
    %v923 = vmul.f32 %v859, %v859
    %v924 = vmul.f32 %v860, %v860
    %v925 = vmul.f32 %v861, %v861
    %v926 = vmul.f32 %v862, %v862
    %v927 = vmul.f32 %v863, %v863
    %v928 = vmul.f32 %v864, %v864
    %v929 = vmul.f32 %v865, %v865
    %v930 = vmul.f32 %v866, %v866
    %v931 = vmul.f32 %v867, %v867
    %v932 = vmul.f32 %v868, %v868
    %v933 = vmul.f32 %v869, %v869
    %v934 = vmul.f32 %v870, %v870
    %v935 = vmul.f32 %v871, %v871
    %v936 = vmul.f32 %v872, %v872
    %v937 = vmul.f32 %v873, %v873
    %v938 = vmul.f32 %v874, %v874
    %v939 = vsub.f32 %v875, %v907
    %v940 = vsub.f32 %v876, %v908
    %v941 = vsub.f32 %v877, %v909
    %v942 = vsub.f32 %v878, %v910
    %v943 = vsub.f32 %v879, %v911
    %v944 = vsub.f32 %v880, %v912
    %v945 = vsub.f32 %v881, %v913
    %v946 = vsub.f32 %v882, %v914
    %v947 = vsub.f32 %v883, %v915
    %v948 = vsub.f32 %v884, %v916
    %v949 = vsub.f32 %v885, %v917
    %v950 = vsub.f32 %v886, %v918
    %v951 = vsub.f32 %v887, %v919
    %v952 = vsub.f32 %v888, %v920
    %v953 = vsub.f32 %v889, %v921
    %v954 = vsub.f32 %v890, %v922
    %v955 = vsub.f32 %v891, %v923
    %v956 = vsub.f32 %v892, %v924
    %v957 = vsub.f32 %v893, %v925
    %v958 = vsub.f32 %v894, %v926
    %v959 = vsub.f32 %v895, %v927
    %v960 = vsub.f32 %v896, %v928
    %v961 = vsub.f32 %v897, %v929
    %v962 = vsub.f32 %v898, %v930
    %v963 = vsub.f32 %v899, %v931
    %v964 = vsub.f32 %v900, %v932
    %v965 = vsub.f32 %v901, %v933
    %v966 = vsub.f32 %v902, %v934
    %v967 = vsub.f32 %v903, %v935
    %v968 = vsub.f32 %v904, %v936
    %v969 = vsub.f32 %v905, %v937
    %v970 = vsub.f32 %v906, %v938
    %v971 = vmax.f32 %v939, 0.0
    %v972 = vmax.f32 %v940, 0.0
    %v973 = vmax.f32 %v941, 0.0
    %v974 = vmax.f32 %v942, 0.0
    %v975 = vmax.f32 %v943, 0.0
    %v976 = vmax.f32 %v944, 0.0
    %v977 = vmax.f32 %v945, 0.0
    %v978 = vmax.f32 %v946, 0.0
    %v979 = vmax.f32 %v947, 0.0
    %v980 = vmax.f32 %v948, 0.0
    %v981 = vmax.f32 %v949, 0.0
    %v982 = vmax.f32 %v950, 0.0
    %v983 = vmax.f32 %v951, 0.0
    %v984 = vmax.f32 %v952, 0.0
    %v985 = vmax.f32 %v953, 0.0
    %v986 = vmax.f32 %v954, 0.0
    %v987 = vmax.f32 %v955, 0.0
    %v988 = vmax.f32 %v956, 0.0
    %v989 = vmax.f32 %v957, 0.0
    %v990 = vmax.f32 %v958, 0.0
    %v991 = vmax.f32 %v959, 0.0
    %v992 = vmax.f32 %v960, 0.0
    %v993 = vmax.f32 %v961, 0.0
    %v994 = vmax.f32 %v962, 0.0
    %v995 = vmax.f32 %v963, 0.0
    %v996 = vmax.f32 %v964, 0.0
    %v997 = vmax.f32 %v965, 0.0
    %v998 = vmax.f32 %v966, 0.0
    %v999 = vmax.f32 %v967, 0.0
    %v1000 = vmax.f32 %v968, 0.0
    %v1001 = vmax.f32 %v969, 0.0
    %v1002 = vmax.f32 %v970, 0.0
    %v1003 = vsub.f32 %v587, %v843
    %v1004 = vsub.f32 %v588, %v844
    %v1005 = vsub.f32 %v589, %v845
    %v1006 = vsub.f32 %v590, %v846
    %v1007 = vsub.f32 %v591, %v847
    %v1008 = vsub.f32 %v592, %v848
    %v1009 = vsub.f32 %v593, %v849
    %v1010 = vsub.f32 %v594, %v850
    %v1011 = vsub.f32 %v595, %v851
    %v1012 = vsub.f32 %v596, %v852
    %v1013 = vsub.f32 %v597, %v853
    %v1014 = vsub.f32 %v598, %v854
    %v1015 = vsub.f32 %v599, %v855
    %v1016 = vsub.f32 %v600, %v856
    %v1017 = vsub.f32 %v601, %v857
    %v1018 = vsub.f32 %v602, %v858
    %v1019 = vsub.f32 %v603, %v859
    %v1020 = vsub.f32 %v604, %v860
    %v1021 = vsub.f32 %v605, %v861
    %v1022 = vsub.f32 %v606, %v862
    %v1023 = vsub.f32 %v607, %v863
    %v1024 = vsub.f32 %v608, %v864
    %v1025 = vsub.f32 %v609, %v865
    %v1026 = vsub.f32 %v610, %v866
    %v1027 = vsub.f32 %v611, %v867
    %v1028 = vsub.f32 %v612, %v868
    %v1029 = vsub.f32 %v613, %v869
    %v1030 = vsub.f32 %v614, %v870
    %v1031 = vsub.f32 %v615, %v871
    %v1032 = vsub.f32 %v616, %v872
    %v1033 = vsub.f32 %v617, %v873
    %v1034 = vsub.f32 %v618, %v874
    %v1035 = vadd.f32 %v971, 1e-12
    %v1036 = vadd.f32 %v972, 1e-12
    %v1037 = vadd.f32 %v973, 1e-12
    %v1038 = vadd.f32 %v974, 1e-12
    %v1039 = vadd.f32 %v975, 1e-12
    %v1040 = vadd.f32 %v976, 1e-12
    %v1041 = vadd.f32 %v977, 1e-12
    %v1042 = vadd.f32 %v978, 1e-12
    %v1043 = vadd.f32 %v979, 1e-12
    %v1044 = vadd.f32 %v980, 1e-12
    %v1045 = vadd.f32 %v981, 1e-12
    %v1046 = vadd.f32 %v982, 1e-12
    %v1047 = vadd.f32 %v983, 1e-12
    %v1048 = vadd.f32 %v984, 1e-12
    %v1049 = vadd.f32 %v985, 1e-12
    %v1050 = vadd.f32 %v986, 1e-12
    %v1051 = vadd.f32 %v987, 1e-12
    %v1052 = vadd.f32 %v988, 1e-12
    %v1053 = vadd.f32 %v989, 1e-12
    %v1054 = vadd.f32 %v990, 1e-12
    %v1055 = vadd.f32 %v991, 1e-12
    %v1056 = vadd.f32 %v992, 1e-12
    %v1057 = vadd.f32 %v993, 1e-12
    %v1058 = vadd.f32 %v994, 1e-12
    %v1059 = vadd.f32 %v995, 1e-12
    %v1060 = vadd.f32 %v996, 1e-12
    %v1061 = vadd.f32 %v997, 1e-12
    %v1062 = vadd.f32 %v998, 1e-12
    %v1063 = vadd.f32 %v999, 1e-12
    %v1064 = vadd.f32 %v1000, 1e-12
    %v1065 = vadd.f32 %v1001, 1e-12
    %v1066 = vadd.f32 %v1002, 1e-12
    %v1067 = vrsqrt.pop %v1035
    %v1068 = vmul.f32 %v1067, %v1035
    %v1069 = vmul.f32 %v1068, %v1067
    %v1070 = vmul.f32 0.5, %v1069
    %v1071 = vsub.f32 1.5, %v1070
    %v1072 = vmul.f32 %v1067, %v1071
    %vm1073 = vweird.f32 %v1035
    %vm1074 = vweird.f32 %v1067
    %vm1075 = vmor %vm1073, %vm1074
    %v1076 = vsel %vm1075, %v1067, %v1072
    %v1077 = vrsqrt.pop %v1036
    %v1078 = vmul.f32 %v1077, %v1036
    %v1079 = vmul.f32 %v1078, %v1077
    %v1080 = vmul.f32 0.5, %v1079
    %v1081 = vsub.f32 1.5, %v1080
    %v1082 = vmul.f32 %v1077, %v1081
    %vm1083 = vweird.f32 %v1036
    %vm1084 = vweird.f32 %v1077
    %vm1085 = vmor %vm1083, %vm1084
    %v1086 = vsel %vm1085, %v1077, %v1082
    %v1087 = vrsqrt.pop %v1037
    %v1088 = vmul.f32 %v1087, %v1037
    %v1089 = vmul.f32 %v1088, %v1087
    %v1090 = vmul.f32 0.5, %v1089
    %v1091 = vsub.f32 1.5, %v1090
    %v1092 = vmul.f32 %v1087, %v1091
    %vm1093 = vweird.f32 %v1037
    %vm1094 = vweird.f32 %v1087
    %vm1095 = vmor %vm1093, %vm1094
    %v1096 = vsel %vm1095, %v1087, %v1092
    %v1097 = vrsqrt.pop %v1038
    %v1098 = vmul.f32 %v1097, %v1038
    %v1099 = vmul.f32 %v1098, %v1097
    %v1100 = vmul.f32 0.5, %v1099
    %v1101 = vsub.f32 1.5, %v1100
    %v1102 = vmul.f32 %v1097, %v1101
    %vm1103 = vweird.f32 %v1038
    %vm1104 = vweird.f32 %v1097
    %vm1105 = vmor %vm1103, %vm1104
    %v1106 = vsel %vm1105, %v1097, %v1102
    %v1107 = vrsqrt.pop %v1039
    %v1108 = vmul.f32 %v1107, %v1039
    %v1109 = vmul.f32 %v1108, %v1107
    %v1110 = vmul.f32 0.5, %v1109
    %v1111 = vsub.f32 1.5, %v1110
    %v1112 = vmul.f32 %v1107, %v1111
    %vm1113 = vweird.f32 %v1039
    %vm1114 = vweird.f32 %v1107
    %vm1115 = vmor %vm1113, %vm1114
    %v1116 = vsel %vm1115, %v1107, %v1112
    %v1117 = vrsqrt.pop %v1040
    %v1118 = vmul.f32 %v1117, %v1040
    %v1119 = vmul.f32 %v1118, %v1117
    %v1120 = vmul.f32 0.5, %v1119
    %v1121 = vsub.f32 1.5, %v1120
    %v1122 = vmul.f32 %v1117, %v1121
    %vm1123 = vweird.f32 %v1040
    %vm1124 = vweird.f32 %v1117
    %vm1125 = vmor %vm1123, %vm1124
    %v1126 = vsel %vm1125, %v1117, %v1122
    %v1127 = vrsqrt.pop %v1041
    %v1128 = vmul.f32 %v1127, %v1041
    %v1129 = vmul.f32 %v1128, %v1127
    %v1130 = vmul.f32 0.5, %v1129
    %v1131 = vsub.f32 1.5, %v1130
    %v1132 = vmul.f32 %v1127, %v1131
    %vm1133 = vweird.f32 %v1041
    %vm1134 = vweird.f32 %v1127
    %vm1135 = vmor %vm1133, %vm1134
    %v1136 = vsel %vm1135, %v1127, %v1132
    %v1137 = vrsqrt.pop %v1042
    %v1138 = vmul.f32 %v1137, %v1042
    %v1139 = vmul.f32 %v1138, %v1137
    %v1140 = vmul.f32 0.5, %v1139
    %v1141 = vsub.f32 1.5, %v1140
    %v1142 = vmul.f32 %v1137, %v1141
    %vm1143 = vweird.f32 %v1042
    %vm1144 = vweird.f32 %v1137
    %vm1145 = vmor %vm1143, %vm1144
    %v1146 = vsel %vm1145, %v1137, %v1142
    %v1147 = vrsqrt.pop %v1043
    %v1148 = vmul.f32 %v1147, %v1043
    %v1149 = vmul.f32 %v1148, %v1147
    %v1150 = vmul.f32 0.5, %v1149
    %v1151 = vsub.f32 1.5, %v1150
    %v1152 = vmul.f32 %v1147, %v1151
    %vm1153 = vweird.f32 %v1043
    %vm1154 = vweird.f32 %v1147
    %vm1155 = vmor %vm1153, %vm1154
    %v1156 = vsel %vm1155, %v1147, %v1152
    %v1157 = vrsqrt.pop %v1044
    %v1158 = vmul.f32 %v1157, %v1044
    %v1159 = vmul.f32 %v1158, %v1157
    %v1160 = vmul.f32 0.5, %v1159
    %v1161 = vsub.f32 1.5, %v1160
    %v1162 = vmul.f32 %v1157, %v1161
    %vm1163 = vweird.f32 %v1044
    %vm1164 = vweird.f32 %v1157
    %vm1165 = vmor %vm1163, %vm1164
    %v1166 = vsel %vm1165, %v1157, %v1162
    %v1167 = vrsqrt.pop %v1045
    %v1168 = vmul.f32 %v1167, %v1045
    %v1169 = vmul.f32 %v1168, %v1167
    %v1170 = vmul.f32 0.5, %v1169
    %v1171 = vsub.f32 1.5, %v1170
    %v1172 = vmul.f32 %v1167, %v1171
    %vm1173 = vweird.f32 %v1045
    %vm1174 = vweird.f32 %v1167
    %vm1175 = vmor %vm1173, %vm1174
    %v1176 = vsel %vm1175, %v1167, %v1172
    %v1177 = vrsqrt.pop %v1046
    %v1178 = vmul.f32 %v1177, %v1046
    %v1179 = vmul.f32 %v1178, %v1177
    %v1180 = vmul.f32 0.5, %v1179
    %v1181 = vsub.f32 1.5, %v1180
    %v1182 = vmul.f32 %v1177, %v1181
    %vm1183 = vweird.f32 %v1046
    %vm1184 = vweird.f32 %v1177
    %vm1185 = vmor %vm1183, %vm1184
    %v1186 = vsel %vm1185, %v1177, %v1182
    %v1187 = vrsqrt.pop %v1047
    %v1188 = vmul.f32 %v1187, %v1047
    %v1189 = vmul.f32 %v1188, %v1187
    %v1190 = vmul.f32 0.5, %v1189
    %v1191 = vsub.f32 1.5, %v1190
    %v1192 = vmul.f32 %v1187, %v1191
    %vm1193 = vweird.f32 %v1047
    %vm1194 = vweird.f32 %v1187
    %vm1195 = vmor %vm1193, %vm1194
    %v1196 = vsel %vm1195, %v1187, %v1192
    %v1197 = vrsqrt.pop %v1048
    %v1198 = vmul.f32 %v1197, %v1048
    %v1199 = vmul.f32 %v1198, %v1197
    %v1200 = vmul.f32 0.5, %v1199
    %v1201 = vsub.f32 1.5, %v1200
    %v1202 = vmul.f32 %v1197, %v1201
    %vm1203 = vweird.f32 %v1048
    %vm1204 = vweird.f32 %v1197
    %vm1205 = vmor %vm1203, %vm1204
    %v1206 = vsel %vm1205, %v1197, %v1202
    %v1207 = vrsqrt.pop %v1049
    %v1208 = vmul.f32 %v1207, %v1049
    %v1209 = vmul.f32 %v1208, %v1207
    %v1210 = vmul.f32 0.5, %v1209
    %v1211 = vsub.f32 1.5, %v1210
    %v1212 = vmul.f32 %v1207, %v1211
    %vm1213 = vweird.f32 %v1049
    %vm1214 = vweird.f32 %v1207
    %vm1215 = vmor %vm1213, %vm1214
    %v1216 = vsel %vm1215, %v1207, %v1212
    %v1217 = vrsqrt.pop %v1050
    %v1218 = vmul.f32 %v1217, %v1050
    %v1219 = vmul.f32 %v1218, %v1217
    %v1220 = vmul.f32 0.5, %v1219
    %v1221 = vsub.f32 1.5, %v1220
    %v1222 = vmul.f32 %v1217, %v1221
    %vm1223 = vweird.f32 %v1050
    %vm1224 = vweird.f32 %v1217
    %vm1225 = vmor %vm1223, %vm1224
    %v1226 = vsel %vm1225, %v1217, %v1222
    %v1227 = vrsqrt.pop %v1051
    %v1228 = vmul.f32 %v1227, %v1051
    %v1229 = vmul.f32 %v1228, %v1227
    %v1230 = vmul.f32 0.5, %v1229
    %v1231 = vsub.f32 1.5, %v1230
    %v1232 = vmul.f32 %v1227, %v1231
    %vm1233 = vweird.f32 %v1051
    %vm1234 = vweird.f32 %v1227
    %vm1235 = vmor %vm1233, %vm1234
    %v1236 = vsel %vm1235, %v1227, %v1232
    %v1237 = vrsqrt.pop %v1052
    %v1238 = vmul.f32 %v1237, %v1052
    %v1239 = vmul.f32 %v1238, %v1237
    %v1240 = vmul.f32 0.5, %v1239
    %v1241 = vsub.f32 1.5, %v1240
    %v1242 = vmul.f32 %v1237, %v1241
    %vm1243 = vweird.f32 %v1052
    %vm1244 = vweird.f32 %v1237
    %vm1245 = vmor %vm1243, %vm1244
    %v1246 = vsel %vm1245, %v1237, %v1242
    %v1247 = vrsqrt.pop %v1053
    %v1248 = vmul.f32 %v1247, %v1053
    %v1249 = vmul.f32 %v1248, %v1247
    %v1250 = vmul.f32 0.5, %v1249
    %v1251 = vsub.f32 1.5, %v1250
    %v1252 = vmul.f32 %v1247, %v1251
    %vm1253 = vweird.f32 %v1053
    %vm1254 = vweird.f32 %v1247
    %vm1255 = vmor %vm1253, %vm1254
    %v1256 = vsel %vm1255, %v1247, %v1252
    %v1257 = vrsqrt.pop %v1054
    %v1258 = vmul.f32 %v1257, %v1054
    %v1259 = vmul.f32 %v1258, %v1257
    %v1260 = vmul.f32 0.5, %v1259
    %v1261 = vsub.f32 1.5, %v1260
    %v1262 = vmul.f32 %v1257, %v1261
    %vm1263 = vweird.f32 %v1054
    %vm1264 = vweird.f32 %v1257
    %vm1265 = vmor %vm1263, %vm1264
    %v1266 = vsel %vm1265, %v1257, %v1262
    %v1267 = vrsqrt.pop %v1055
    %v1268 = vmul.f32 %v1267, %v1055
    %v1269 = vmul.f32 %v1268, %v1267
    %v1270 = vmul.f32 0.5, %v1269
    %v1271 = vsub.f32 1.5, %v1270
    %v1272 = vmul.f32 %v1267, %v1271
    %vm1273 = vweird.f32 %v1055
    %vm1274 = vweird.f32 %v1267
    %vm1275 = vmor %vm1273, %vm1274
    %v1276 = vsel %vm1275, %v1267, %v1272
    %v1277 = vrsqrt.pop %v1056
    %v1278 = vmul.f32 %v1277, %v1056
    %v1279 = vmul.f32 %v1278, %v1277
    %v1280 = vmul.f32 0.5, %v1279
    %v1281 = vsub.f32 1.5, %v1280
    %v1282 = vmul.f32 %v1277, %v1281
    %vm1283 = vweird.f32 %v1056
    %vm1284 = vweird.f32 %v1277
    %vm1285 = vmor %vm1283, %vm1284
    %v1286 = vsel %vm1285, %v1277, %v1282
    %v1287 = vrsqrt.pop %v1057
    %v1288 = vmul.f32 %v1287, %v1057
    %v1289 = vmul.f32 %v1288, %v1287
    %v1290 = vmul.f32 0.5, %v1289
    %v1291 = vsub.f32 1.5, %v1290
    %v1292 = vmul.f32 %v1287, %v1291
    %vm1293 = vweird.f32 %v1057
    %vm1294 = vweird.f32 %v1287
    %vm1295 = vmor %vm1293, %vm1294
    %v1296 = vsel %vm1295, %v1287, %v1292
    %v1297 = vrsqrt.pop %v1058
    %v1298 = vmul.f32 %v1297, %v1058
    %v1299 = vmul.f32 %v1298, %v1297
    %v1300 = vmul.f32 0.5, %v1299
    %v1301 = vsub.f32 1.5, %v1300
    %v1302 = vmul.f32 %v1297, %v1301
    %vm1303 = vweird.f32 %v1058
    %vm1304 = vweird.f32 %v1297
    %vm1305 = vmor %vm1303, %vm1304
    %v1306 = vsel %vm1305, %v1297, %v1302
    %v1307 = vrsqrt.pop %v1059
    %v1308 = vmul.f32 %v1307, %v1059
    %v1309 = vmul.f32 %v1308, %v1307
    %v1310 = vmul.f32 0.5, %v1309
    %v1311 = vsub.f32 1.5, %v1310
    %v1312 = vmul.f32 %v1307, %v1311
    %vm1313 = vweird.f32 %v1059
    %vm1314 = vweird.f32 %v1307
    %vm1315 = vmor %vm1313, %vm1314
    %v1316 = vsel %vm1315, %v1307, %v1312
    %v1317 = vrsqrt.pop %v1060
    %v1318 = vmul.f32 %v1317, %v1060
    %v1319 = vmul.f32 %v1318, %v1317
    %v1320 = vmul.f32 0.5, %v1319
    %v1321 = vsub.f32 1.5, %v1320
    %v1322 = vmul.f32 %v1317, %v1321
    %vm1323 = vweird.f32 %v1060
    %vm1324 = vweird.f32 %v1317
    %vm1325 = vmor %vm1323, %vm1324
    %v1326 = vsel %vm1325, %v1317, %v1322
    %v1327 = vrsqrt.pop %v1061
    %v1328 = vmul.f32 %v1327, %v1061
    %v1329 = vmul.f32 %v1328, %v1327
    %v1330 = vmul.f32 0.5, %v1329
    %v1331 = vsub.f32 1.5, %v1330
    %v1332 = vmul.f32 %v1327, %v1331
    %vm1333 = vweird.f32 %v1061
    %vm1334 = vweird.f32 %v1327
    %vm1335 = vmor %vm1333, %vm1334
    %v1336 = vsel %vm1335, %v1327, %v1332
    %v1337 = vrsqrt.pop %v1062
    %v1338 = vmul.f32 %v1337, %v1062
    %v1339 = vmul.f32 %v1338, %v1337
    %v1340 = vmul.f32 0.5, %v1339
    %v1341 = vsub.f32 1.5, %v1340
    %v1342 = vmul.f32 %v1337, %v1341
    %vm1343 = vweird.f32 %v1062
    %vm1344 = vweird.f32 %v1337
    %vm1345 = vmor %vm1343, %vm1344
    %v1346 = vsel %vm1345, %v1337, %v1342
    %v1347 = vrsqrt.pop %v1063
    %v1348 = vmul.f32 %v1347, %v1063
    %v1349 = vmul.f32 %v1348, %v1347
    %v1350 = vmul.f32 0.5, %v1349
    %v1351 = vsub.f32 1.5, %v1350
    %v1352 = vmul.f32 %v1347, %v1351
    %vm1353 = vweird.f32 %v1063
    %vm1354 = vweird.f32 %v1347
    %vm1355 = vmor %vm1353, %vm1354
    %v1356 = vsel %vm1355, %v1347, %v1352
    %v1357 = vrsqrt.pop %v1064
    %v1358 = vmul.f32 %v1357, %v1064
    %v1359 = vmul.f32 %v1358, %v1357
    %v1360 = vmul.f32 0.5, %v1359
    %v1361 = vsub.f32 1.5, %v1360
    %v1362 = vmul.f32 %v1357, %v1361
    %vm1363 = vweird.f32 %v1064
    %vm1364 = vweird.f32 %v1357
    %vm1365 = vmor %vm1363, %vm1364
    %v1366 = vsel %vm1365, %v1357, %v1362
    %v1367 = vrsqrt.pop %v1065
    %v1368 = vmul.f32 %v1367, %v1065
    %v1369 = vmul.f32 %v1368, %v1367
    %v1370 = vmul.f32 0.5, %v1369
    %v1371 = vsub.f32 1.5, %v1370
    %v1372 = vmul.f32 %v1367, %v1371
    %vm1373 = vweird.f32 %v1065
    %vm1374 = vweird.f32 %v1367
    %vm1375 = vmor %vm1373, %vm1374
    %v1376 = vsel %vm1375, %v1367, %v1372
    %v1377 = vrsqrt.pop %v1066
    %v1378 = vmul.f32 %v1377, %v1066
    %v1379 = vmul.f32 %v1378, %v1377
    %v1380 = vmul.f32 0.5, %v1379
    %v1381 = vsub.f32 1.5, %v1380
    %v1382 = vmul.f32 %v1377, %v1381
    %vm1383 = vweird.f32 %v1066
    %vm1384 = vweird.f32 %v1377
    %vm1385 = vmor %vm1383, %vm1384
    %v1386 = vsel %vm1385, %v1377, %v1382
    %v1387 = vmul.f32 %v1003, %v1076
    %v1388 = vmul.f32 %v1004, %v1086
    %v1389 = vmul.f32 %v1005, %v1096
    %v1390 = vmul.f32 %v1006, %v1106
    %v1391 = vmul.f32 %v1007, %v1116
    %v1392 = vmul.f32 %v1008, %v1126
    %v1393 = vmul.f32 %v1009, %v1136
    %v1394 = vmul.f32 %v1010, %v1146
    %v1395 = vmul.f32 %v1011, %v1156
    %v1396 = vmul.f32 %v1012, %v1166
    %v1397 = vmul.f32 %v1013, %v1176
    %v1398 = vmul.f32 %v1014, %v1186
    %v1399 = vmul.f32 %v1015, %v1196
    %v1400 = vmul.f32 %v1016, %v1206
    %v1401 = vmul.f32 %v1017, %v1216
    %v1402 = vmul.f32 %v1018, %v1226
    %v1403 = vmul.f32 %v1019, %v1236
    %v1404 = vmul.f32 %v1020, %v1246
    %v1405 = vmul.f32 %v1021, %v1256
    %v1406 = vmul.f32 %v1022, %v1266
    %v1407 = vmul.f32 %v1023, %v1276
    %v1408 = vmul.f32 %v1024, %v1286
    %v1409 = vmul.f32 %v1025, %v1296
    %v1410 = vmul.f32 %v1026, %v1306
    %v1411 = vmul.f32 %v1027, %v1316
    %v1412 = vmul.f32 %v1028, %v1326
    %v1413 = vmul.f32 %v1029, %v1336
    %v1414 = vmul.f32 %v1030, %v1346
    %v1415 = vmul.f32 %v1031, %v1356
    %v1416 = vmul.f32 %v1032, %v1366
    %v1417 = vmul.f32 %v1033, %v1376
    %v1418 = vmul.f32 %v1034, %v1386
    %v1419 = vld [vmem:[%s4] sm:$0x1]
    %v1421 = vperm.slane %v1419, 0
    %v1423 = vmul.f32 %v1387, %v1421
    %v1424 = vmul.f32 %v1388, %v1421
    %v1425 = vmul.f32 %v1389, %v1421
    %v1426 = vmul.f32 %v1390, %v1421
    %v1427 = vmul.f32 %v1391, %v1421
    %v1428 = vmul.f32 %v1392, %v1421
    %v1429 = vmul.f32 %v1393, %v1421
    %v1430 = vmul.f32 %v1394, %v1421
    %v1431 = vmul.f32 %v1395, %v1421
    %v1432 = vmul.f32 %v1396, %v1421
    %v1433 = vmul.f32 %v1397, %v1421
    %v1434 = vmul.f32 %v1398, %v1421
    %v1435 = vmul.f32 %v1399, %v1421
    %v1436 = vmul.f32 %v1400, %v1421
    %v1437 = vmul.f32 %v1401, %v1421
    %v1438 = vmul.f32 %v1402, %v1421
    %v1439 = vmul.f32 %v1403, %v1421
    %v1440 = vmul.f32 %v1404, %v1421
    %v1441 = vmul.f32 %v1405, %v1421
    %v1442 = vmul.f32 %v1406, %v1421
    %v1443 = vmul.f32 %v1407, %v1421
    %v1444 = vmul.f32 %v1408, %v1421
    %v1445 = vmul.f32 %v1409, %v1421
    %v1446 = vmul.f32 %v1410, %v1421
    %v1447 = vmul.f32 %v1411, %v1421
    %v1448 = vmul.f32 %v1412, %v1421
    %v1449 = vmul.f32 %v1413, %v1421
    %v1450 = vmul.f32 %v1414, %v1421
    %v1451 = vmul.f32 %v1415, %v1421
    %v1452 = vmul.f32 %v1416, %v1421
    %v1453 = vmul.f32 %v1417, %v1421
    %v1454 = vmul.f32 %v1418, %v1421
    %v1455 = vld [vmem:[%s5] sm:$0x1]
    %v1457 = vperm.slane %v1455, 0
    %v1459 = vadd.f32 %v1423, %v1457
    %v1460 = vadd.f32 %v1424, %v1457
    %v1461 = vadd.f32 %v1425, %v1457
    %v1462 = vadd.f32 %v1426, %v1457
    %v1463 = vadd.f32 %v1427, %v1457
    %v1464 = vadd.f32 %v1428, %v1457
    %v1465 = vadd.f32 %v1429, %v1457
    %v1466 = vadd.f32 %v1430, %v1457
    %v1467 = vadd.f32 %v1431, %v1457
    %v1468 = vadd.f32 %v1432, %v1457
    %v1469 = vadd.f32 %v1433, %v1457
    %v1470 = vadd.f32 %v1434, %v1457
    %v1471 = vadd.f32 %v1435, %v1457
    %v1472 = vadd.f32 %v1436, %v1457
    %v1473 = vadd.f32 %v1437, %v1457
    %v1474 = vadd.f32 %v1438, %v1457
    %v1475 = vadd.f32 %v1439, %v1457
    %v1476 = vadd.f32 %v1440, %v1457
    %v1477 = vadd.f32 %v1441, %v1457
    %v1478 = vadd.f32 %v1442, %v1457
    %v1479 = vadd.f32 %v1443, %v1457
    %v1480 = vadd.f32 %v1444, %v1457
    %v1481 = vadd.f32 %v1445, %v1457
    %v1482 = vadd.f32 %v1446, %v1457
    %v1483 = vadd.f32 %v1447, %v1457
    %v1484 = vadd.f32 %v1448, %v1457
    %v1485 = vadd.f32 %v1449, %v1457
    %v1486 = vadd.f32 %v1450, %v1457
    %v1487 = vadd.f32 %v1451, %v1457
    %v1488 = vadd.f32 %v1452, %v1457
    %v1489 = vadd.f32 %v1453, %v1457
    %v1490 = vadd.f32 %v1454, %v1457
    %1491 = vst.msk [vmem:[%s7] sm:$0xff] %vm172, %v1459
    %1492 = vst.msk [vmem:[%s7 + $0x8] sm:$0xff] %vm172, %v1460
    %1493 = vst.msk [vmem:[%s7 + $0x10] sm:$0xff] %vm172, %v1461
    %1494 = vst.msk [vmem:[%s7 + $0x18] sm:$0xff] %vm172, %v1462
    %1495 = vst.msk [vmem:[%s7 + $0x20] sm:$0xff] %vm172, %v1463
    %1496 = vst.msk [vmem:[%s7 + $0x28] sm:$0xff] %vm172, %v1464
    %1497 = vst.msk [vmem:[%s7 + $0x30] sm:$0xff] %vm172, %v1465
    %1498 = vst.msk [vmem:[%s7 + $0x38] sm:$0xff] %vm172, %v1466
    %1499 = vst.msk [vmem:[%s7 + $0x40] sm:$0xff] %vm172, %v1467
    %1500 = vst.msk [vmem:[%s7 + $0x48] sm:$0xff] %vm172, %v1468
    %1501 = vst.msk [vmem:[%s7 + $0x50] sm:$0xff] %vm172, %v1469
    %1502 = vst.msk [vmem:[%s7 + $0x58] sm:$0xff] %vm172, %v1470
    %1503 = vst.msk [vmem:[%s7 + $0x60] sm:$0xff] %vm172, %v1471
    %1504 = vst.msk [vmem:[%s7 + $0x68] sm:$0xff] %vm172, %v1472
    %1505 = vst.msk [vmem:[%s7 + $0x70] sm:$0xff] %vm172, %v1473
    %1506 = vst.msk [vmem:[%s7 + $0x78] sm:$0xff] %vm172, %v1474
    %1507 = vst.msk [vmem:[%s7 + $0x80] sm:$0xff] %vm172, %v1475
    %1508 = vst.msk [vmem:[%s7 + $0x88] sm:$0xff] %vm172, %v1476
    %1509 = vst.msk [vmem:[%s7 + $0x90] sm:$0xff] %vm172, %v1477
    %1510 = vst.msk [vmem:[%s7 + $0x98] sm:$0xff] %vm172, %v1478
    %1511 = vst.msk [vmem:[%s7 + $0xa0] sm:$0xff] %vm172, %v1479
    %1512 = vst.msk [vmem:[%s7 + $0xa8] sm:$0xff] %vm172, %v1480
    %1513 = vst.msk [vmem:[%s7 + $0xb0] sm:$0xff] %vm172, %v1481
    %1514 = vst.msk [vmem:[%s7 + $0xb8] sm:$0xff] %vm172, %v1482
    %1515 = vst.msk [vmem:[%s7 + $0xc0] sm:$0xff] %vm172, %v1483
    %1516 = vst.msk [vmem:[%s7 + $0xc8] sm:$0xff] %vm172, %v1484
    %1517 = vst.msk [vmem:[%s7 + $0xd0] sm:$0xff] %vm172, %v1485
    %1518 = vst.msk [vmem:[%s7 + $0xd8] sm:$0xff] %vm172, %v1486
    %1519 = vst.msk [vmem:[%s7 + $0xe0] sm:$0xff] %vm172, %v1487
    %1520 = vst.msk [vmem:[%s7 + $0xe8] sm:$0xff] %vm172, %v1488
    %1521 = vst.msk [vmem:[%s7 + $0xf0] sm:$0xff] %vm172, %v1489
    %1522 = vst.msk [vmem:[%s7 + $0xf8] sm:$0xff] %vm172, %v1490
    // Predicated region
    $region34: #{qaware_bert_self_output.1} parent=1 // pred_check
      _
    $region35: #{qaware_bert_self_output.1} parent=1 // pred_check_branch
      %1524 = sbr.rel (0) target = $region37
    $region36: #{qaware_bert_self_output.1} parent=1 // pred_region
      _
    $region37: #{qaware_bert_self_output.1} parent=1 // pred_fallthru
      _
    // Predicated region
    $region38: #{qaware_bert_self_output.1} parent=1 // pred_check
      _
    $region39: #{qaware_bert_self_output.1} parent=1 // pred_check_branch
      %1526 = sbr.rel (0) target = $region41
    $region40: #{qaware_bert_self_output.1} parent=1 // pred_region
      _
    $region41: #{qaware_bert_self_output.1} parent=1 // pred_fallthru
      _
    %1527 = vsyncpa [#allocation3], 1

</llo_original>
